<compile_context>
chip_gen: v7x
topology: tpu7x:2x2x1
jax: 0.10.0
libtpu: 0.0.40
codegen_flags: <defaults>
</compile_context>

<pallas_src>
import functools

import jax
import jax.numpy as jnp
from jax.experimental import pallas as pl
from jax.experimental.pallas import tpu as pltpu


def _softmax_last(x):
    m = jnp.max(x, axis=-1, keepdims=True)
    e = jnp.exp(x - m)
    # Exact normalisation: the attention weights are a returned output, so keep
    # full f32 accuracy (the reciprocal runs on the small reduced tensor only).
    return e * (1.0 / jnp.sum(e, axis=-1, keepdims=True))


def graph_attention_kernel(seq_ref, graph_ref, wqkv_ref, bqkv_ref, wo_ref, bo_ref,
                           out_ref, *maybe_attnw_ref,
                           num_heads, head_dim, batch_block, flatten_attn):
    H, D, Bt = num_heads, head_dim, batch_block
    S, E = seq_ref.shape[1], seq_ref.shape[2]
    attnw_ref = maybe_attnw_ref[0] if maybe_attnw_ref else None

    x = seq_ref[...].reshape(Bt * S, E)      # leading-dim merge only (free)
    g = graph_ref[...]                       # (Bt, 1, D)

    # One fused QKV projection: a single MXU call with M = Bt*S rows.
    # The 1/sqrt(D) score scale is pre-folded into the Q third of wqkv/bqkv.
    qkv = (jnp.dot(x, wqkv_ref[...], preferred_element_type=jnp.float32)
           + bqkv_ref[...])                  # (Bt*S, 3E)

    # Single whole-block relayout to head-major layout instead of 3*H unaligned
    # D-wide lane slices: (Bt*S, 3E) -> (Bt, S, 3H, D) -> (Bt, 3H, S, D).
    qkv = jnp.swapaxes(qkv.reshape(Bt, S, 3 * H, D), 1, 2)
    q = qkv[:, 0 * H:1 * H].reshape(Bt * H, S, D)
    k = qkv[:, 1 * H:2 * H].reshape(Bt * H, S, D)
    v = qkv[:, 2 * H:3 * H].reshape(Bt * H, S, D)

    # Scores for every (batch, head) pair in one batched MXU contraction.
    scores = jnp.einsum('nqd,nkd->nqk', q, k,
                        preferred_element_type=jnp.float32)          # (Bt*H,S,S)

    # Graph scores: VPU broadcast-multiply + reduce over D (no M=1 matmuls).
    k4 = qkv[:, 1 * H:2 * H]                                          # (Bt,H,S,D)
    g_scores = jnp.sum(k4 * g[:, None, :, :], axis=-1)                # (Bt,H,S)
    g_scores = g_scores.reshape(Bt * H, S)

    # nn.Dropout is identity in eval mode.
    attn = _softmax_last(scores) * _softmax_last(g_scores)[:, None, :]  # (Bt*H,S,S)

    if attnw_ref is not None:
        if flatten_attn:
            attnw_ref[...] = attn.reshape(Bt, H, S * S)   # lane-dense store
        else:
            attnw_ref[...] = attn.reshape(Bt, H, S, S)

    # Weighted values for all heads, then ONE K=E output projection.
    o = jnp.einsum('nqk,nkd->nqd', attn, v,
                   preferred_element_type=jnp.float32)                # (Bt*H,S,D)
    o = jnp.swapaxes(o.reshape(Bt, H, S, D), 1, 2).reshape(Bt * S, E)
    out = (jnp.dot(o, wo_ref[...], preferred_element_type=jnp.float32)
           + bo_ref[...])                                             # (Bt*S, E)
    out_ref[...] = out.reshape(Bt, S, E)


def _shrink_divisor(B, bt):
    bt -= 1
    while bt > 1 and B % bt:
        bt -= 1
    return max(bt, 1)


def _pick_batch_block(B, S, target_rows=256, min_grid_steps=2):
    """Largest divisor of B giving ~target_rows MXU rows per step, while keeping
    at least `min_grid_steps` grid steps whenever B allows it (v7x megacore
    sharding plus input/output double-buffering on every generation)."""
    bt = max(1, min(B, max(1, target_rows // max(S, 1))))
    while B % bt:
        bt -= 1
    while bt > 1 and B // bt < min_grid_steps:
        bt = _shrink_divisor(B, bt)
    return bt


def _estimate_vmem_bytes(Bt, S, E, H, D, with_attn):
    """Rough per-step f32 footprint: double-buffered batch-dependent I/O,
    single-buffered constant weights, plus live temporaries."""
    seq_io = 2 * Bt * S * E
    graph_io = 2 * Bt * D
    weights = (3 * E * E + 3 * E) + (E * E + E)          # Buffered(1) -> one copy
    out_io = 2 * Bt * S * E
    attn_io = (2 * Bt * H * S * S) if with_attn else 0
    temps = 3 * (Bt * S * 3 * E) + 3 * (Bt * H * S * S) + 2 * (Bt * S * E)
    return 4 * (seq_io + graph_io + weights + out_io + attn_io + temps)


def graph_attention(seq, graph, params, num_heads, return_attn_weights=False):
    B, S, E = seq.shape
    H = num_heads
    if E % H != 0:
        raise ValueError(f"embed_dim={E} must be divisible by num_heads={H}")
    D = E // H
    if graph.shape != (B, 1, D):
        raise ValueError(f"graph_embeddings must be (B, 1, head_dim)={(B, 1, D)}, "
                         f"got {graph.shape}")

    wq, bq, wk, bk, wv, bv, wo, bo = params

    scale = float(D) ** -0.5
    # Fuse Q|K|V into a single (E, 3E) projection; fold the score scale into Q.
    wqkv = jnp.concatenate([wq * scale, wk, wv], axis=1)   # (E, 3E)
    bqkv = jnp.concatenate([bq * scale, bk, bv], axis=1)   # (1, 3E)

    # Generation-aware VMEM budget (~75% of physical per-core VMEM).
    try:
        vmem_cap = int(pltpu.get_tpu_info().vmem_capacity_bytes)
    except Exception:
        vmem_cap = 64 << 20          # conservative fallback (v7x per-core VMEM)
    vmem_budget = int(0.75 * vmem_cap)

    Bt = _pick_batch_block(B, S)
    while Bt > 1 and _estimate_vmem_bytes(Bt, S, E, H, D, return_attn_weights) > vmem_budget:
        Bt = _shrink_divisor(B, Bt)
    est_vmem = _estimate_vmem_bytes(Bt, S, E, H, D, return_attn_weights)
    grid = (B // Bt,)

    # Lane-dense attnw layout when S is not a multiple of 128 (avoids masked
    # partial stores); reshaped back to (B, H, S, S) outside the kernel.
    flatten_attn = return_attn_weights and (S % 128 != 0)

    kernel = functools.partial(graph_attention_kernel,
                               num_heads=H, head_dim=D, batch_block=Bt,
                               flatten_attn=flatten_attn)

    # Constant operands (index_map does not depend on the grid): single buffer.
    const_kw = dict(pipeline_mode=pl.Buffered(1)) if hasattr(pl, "Buffered") else {}

    in_specs = [
        pl.BlockSpec((Bt, S, E), lambda b: (b, 0, 0)),                 # sequence
        pl.BlockSpec((Bt, 1, D), lambda b: (b, 0, 0)),                 # graph
        pl.BlockSpec((E, 3 * E), lambda b: (0, 0), **const_kw),        # fused Wqkv
        pl.BlockSpec((1, 3 * E), lambda b: (0, 0), **const_kw),        # fused bqkv
        pl.BlockSpec((E, E), lambda b: (0, 0), **const_kw),            # Wo
        pl.BlockSpec((1, E), lambda b: (0, 0), **const_kw),            # bo
    ]

    out_spec_seq = pl.BlockSpec((Bt, S, E), lambda b: (b, 0, 0))
    if return_attn_weights:
        if flatten_attn:
            attn_spec = pl.BlockSpec((Bt, H, S * S), lambda b: (b, 0, 0))
            attn_shape = jax.ShapeDtypeStruct((B, H, S * S), jnp.float32)
        else:
            attn_spec = pl.BlockSpec((Bt, H, S, S), lambda b: (b, 0, 0, 0))
            attn_shape = jax.ShapeDtypeStruct((B, H, S, S), jnp.float32)
        out_specs = (out_spec_seq, attn_spec)
        out_shape = (jax.ShapeDtypeStruct((B, S, E), jnp.float32), attn_shape)
    else:
        out_specs = out_spec_seq
        out_shape = jax.ShapeDtypeStruct((B, S, E), jnp.float32)

    cp_kwargs = dict(dimension_semantics=("parallel",))
    default_scoped = 16 << 20        # v5e default scoped-VMEM limit (v6e/v7x: 32 MiB)
    if est_vmem > default_scoped:
        cp_kwargs["vmem_limit_bytes"] = int(min(max(2 * est_vmem, 32 << 20),
                                                vmem_budget))

    result = pl.pallas_call(
        kernel,
        out_shape=out_shape,
        grid_spec=pltpu.PrefetchScalarGridSpec(
            num_scalar_prefetch=0,
            grid=grid,
            in_specs=in_specs,
            out_specs=out_specs,
        ),
        compiler_params=pltpu.CompilerParams(**cp_kwargs),
    )(seq, graph, wqkv, bqkv, wo, bo)

    if return_attn_weights:
        out, attn_w = result
        if flatten_attn:
            attn_w = attn_w.reshape(B, H, S, S)
        return out, attn_w
    return result


def graph_attention_reference(seq, graph, params, num_heads):
    """Plain-JAX mirror of the PyTorch forward (eval mode, mask=None)."""
    B, S, E = seq.shape
    D = E // num_heads
    wq, bq, wk, bk, wv, bv, wo, bo = params

    def lin(x, w, b):
        return x @ w + b[0]

    def split_heads(t):
        return t.reshape(B, S, num_heads, D).transpose(0, 2, 1, 3)   # (B,H,S,D)

    q = split_heads(lin(seq, wq, bq))
    k = split_heads(lin(seq, wk, bk))
    v = split_heads(lin(seq, wv, bv))

    scores = jnp.einsum('bhqd,bhkd->bhqk', q, k) * (D ** -0.5)       # (B,H,S,S)
    g_scores = jnp.einsum('bod,bhkd->bhok', graph, k)                # (B,H,1,S)
    attn = jax.nn.softmax(scores, -1) * jax.nn.softmax(g_scores, -1) # (B,H,S,S)
    out = jnp.einsum('bhqk,bhkd->bhqd', attn, v)                     # (B,H,S,D)
    out = out.transpose(0, 2, 1, 3).reshape(B, S, E)
    return out @ wo + bo[0], attn


def init_params(key, embed_dim):
    ks = jax.random.split(key, 8)

    def w(k):
        return jax.random.normal(k, (embed_dim, embed_dim), jnp.float32) * 0.1

    def b(k):
        return jax.random.normal(k, (1, embed_dim), jnp.float32) * 0.01

    # weights stored pre-transposed as (in, out)
    return (w(ks[0]), b(ks[1]), w(ks[2]), b(ks[3]),
            w(ks[4]), b(ks[5]), w(ks[6]), b(ks[7]))


if __name__ == "__main__":
    B, S, E, H = 2, 8, 32, 4
    D = E // H

    key = jax.random.PRNGKey(0)
    k_seq, k_graph, k_params = jax.random.split(key, 3)

    seq = jax.random.normal(k_seq, (B, S, E), jnp.float32)
    graph = jax.random.normal(k_graph, (B, 1, D), jnp.float32)
    params = init_params(k_params, E)

    out, attn_w = graph_attention(seq, graph, params, H, return_attn_weights=True)
    out = jax.block_until_ready(out)
    attn_w = jax.block_until_ready(attn_w)

    # Also exercise the (default) output-only path.
    out_only = jax.block_until_ready(
        graph_attention(seq, graph, params, H, return_attn_weights=False))

    ref_out, ref_attn = graph_attention_reference(seq, graph, params, H)

    assert out.shape == (B, S, E) and attn_w.shape == (B, H, S, S)
    assert jnp.allclose(out, ref_out, rtol=1e-4, atol=1e-4), \
        float(jnp.max(jnp.abs(out - ref_out)))
    assert jnp.allclose(attn_w, ref_attn, rtol=1e-4, atol=1e-4), \
        float(jnp.max(jnp.abs(attn_w - ref_attn)))
    assert jnp.allclose(out_only, ref_out, rtol=1e-4, atol=1e-4), \
        float(jnp.max(jnp.abs(out_only - ref_out)))

    print("KERNEL_OK")
</pallas_src>

<mosaic_0001>
module attributes {stable_mosaic.version = 11 : i64} {
  func.func @graph_attention_kernel(%arg0: i32, %arg1: memref<1x8x32xf32, #tpu.memory_space<vmem>>, %arg2: memref<1x1x8xf32, #tpu.memory_space<vmem>>, %arg3: memref<32x96xf32, #tpu.memory_space<vmem>>, %arg4: memref<1x96xf32, #tpu.memory_space<vmem>>, %arg5: memref<32x32xf32, #tpu.memory_space<vmem>>, %arg6: memref<1x32xf32, #tpu.memory_space<vmem>>, %arg7: memref<1x8x32xf32, #tpu.memory_space<vmem>>, %arg8: memref<1x4x64xf32, #tpu.memory_space<vmem>>) attributes {dimension_semantics = [#tpu.dimension_semantics<parallel>], iteration_bounds = array<i64: 2>, scalar_prefetch = 0 : i64, scratch_operands = 0 : i64, tpu.core_type = #tpu.core_type<tc>, window_params = [{transform_indices = @transform_0, window_bounds = array<i64: 1, 8, 32>}, {transform_indices = @transform_1, window_bounds = array<i64: 1, 1, 8>}, {pipeline_mode = #tpu.pipeline_mode<synchronous>, transform_indices = @transform_2, window_bounds = array<i64: 32, 96>}, {pipeline_mode = #tpu.pipeline_mode<synchronous>, transform_indices = @transform_3, window_bounds = array<i64: 1, 96>}, {pipeline_mode = #tpu.pipeline_mode<synchronous>, transform_indices = @transform_4, window_bounds = array<i64: 32, 32>}, {pipeline_mode = #tpu.pipeline_mode<synchronous>, transform_indices = @transform_5, window_bounds = array<i64: 1, 32>}, {transform_indices = @transform_6, window_bounds = array<i64: 1, 8, 32>}, {transform_indices = @transform_7, window_bounds = array<i64: 1, 4, 64>}]} {
    %c0 = arith.constant 0 : index
    %c0_0 = arith.constant 0 : index
    %c0_1 = arith.constant 0 : index
    %0 = vector.load %arg1[%c0, %c0_0, %c0_1] : memref<1x8x32xf32, #tpu.memory_space<vmem>>, vector<1x8x32xf32>
    %1 = vector.shape_cast %0 : vector<1x8x32xf32> to vector<8x32xf32>
    %c0_2 = arith.constant 0 : index
    %c0_3 = arith.constant 0 : index
    %c0_4 = arith.constant 0 : index
    %2 = vector.load %arg2[%c0_2, %c0_3, %c0_4] : memref<1x1x8xf32, #tpu.memory_space<vmem>>, vector<1x1x8xf32>
    %c0_5 = arith.constant 0 : index
    %c0_6 = arith.constant 0 : index
    %3 = vector.load %arg3[%c0_5, %c0_6] : memref<32x96xf32, #tpu.memory_space<vmem>>, vector<32x96xf32>
    %cst = arith.constant dense<0.000000e+00> : vector<8x96xf32>
    %4 = tpu.matmul %1, %3, %cst {dimension_numbers = #tpu.dot_dimension_numbers<[1], [0], [0], [1], [0, 0, 1, 1], [], []>} : vector<8x32xf32>, vector<32x96xf32>, vector<8x96xf32> -> vector<8x96xf32>
    %c0_7 = arith.constant 0 : index
    %c0_8 = arith.constant 0 : index
    %5 = vector.load %arg4[%c0_7, %c0_8] : memref<1x96xf32, #tpu.memory_space<vmem>>, vector<1x96xf32>
    %6 = vector.broadcast %5 : vector<1x96xf32> to vector<8x96xf32>
    %7 = arith.addf %4, %6 : vector<8x96xf32>
    %8 = vector.shape_cast %7 : vector<8x96xf32> to vector<1x8x12x8xf32>
    %9 = tpu.transpose %8, [0, 2, 1, 3] : vector<1x8x12x8xf32> -> vector<1x12x8x8xf32>
    %10 = vector.extract_strided_slice %9 {offsets = [0, 0, 0, 0], sizes = [1, 4, 8, 8], strides = [1, 1, 1, 1]} : vector<1x12x8x8xf32> to vector<1x4x8x8xf32>
    %11 = vector.shape_cast %10 : vector<1x4x8x8xf32> to vector<4x8x8xf32>
    %12 = vector.extract_strided_slice %9 {offsets = [0, 4, 0, 0], sizes = [1, 4, 8, 8], strides = [1, 1, 1, 1]} : vector<1x12x8x8xf32> to vector<1x4x8x8xf32>
    %13 = vector.shape_cast %12 : vector<1x4x8x8xf32> to vector<4x8x8xf32>
    %14 = vector.extract_strided_slice %9 {offsets = [0, 8, 0, 0], sizes = [1, 4, 8, 8], strides = [1, 1, 1, 1]} : vector<1x12x8x8xf32> to vector<1x4x8x8xf32>
    %15 = vector.shape_cast %14 : vector<1x4x8x8xf32> to vector<4x8x8xf32>
    "tpu.trace_start"() <{level = 10 : i32, message = "nqd,nkd->nqk"}> : () -> ()
    %cst_9 = arith.constant dense<0.000000e+00> : vector<4x8x8xf32>
    %16 = tpu.matmul %11, %13, %cst_9 {dimension_numbers = #tpu.dot_dimension_numbers<[2], [2], [1], [1], [0, 0, 0, 1, 1, 1], [0], [0]>} : vector<4x8x8xf32>, vector<4x8x8xf32>, vector<4x8x8xf32> -> vector<4x8x8xf32>
    "tpu.trace_stop"() : () -> ()
    %17 = vector.extract_strided_slice %9 {offsets = [0, 4, 0, 0], sizes = [1, 4, 8, 8], strides = [1, 1, 1, 1]} : vector<1x12x8x8xf32> to vector<1x4x8x8xf32>
    %18 = vector.shape_cast %2 : vector<1x1x8xf32> to vector<1x1x1x8xf32>
    %19 = vector.broadcast %18 : vector<1x1x1x8xf32> to vector<1x4x8x8xf32>
    %20 = arith.mulf %17, %19 : vector<1x4x8x8xf32>
    %cst_10 = arith.constant dense<0.000000e+00> : vector<1x4x8xf32>
    %21 = vector.multi_reduction <add>, %20, %cst_10 [3] : vector<1x4x8x8xf32> to vector<1x4x8xf32>
    %22 = vector.shape_cast %21 : vector<1x4x8xf32> to vector<4x8xf32>
    %cst_11 = arith.constant dense<0xFF800000> : vector<4x8xf32>
    %23 = vector.multi_reduction <maximumf>, %16, %cst_11 [2] : vector<4x8x8xf32> to vector<4x8xf32>
    %24 = vector.shape_cast %23 : vector<4x8xf32> to vector<4x8x1xf32>
    %25 = vector.broadcast %24 : vector<4x8x1xf32> to vector<4x8x8xf32>
    %26 = arith.subf %16, %25 : vector<4x8x8xf32>
    %27 = math.exp %26 : vector<4x8x8xf32>
    %cst_12 = arith.constant dense<0.000000e+00> : vector<4x8xf32>
    %28 = vector.multi_reduction <add>, %27, %cst_12 [2] : vector<4x8x8xf32> to vector<4x8xf32>
    %29 = vector.shape_cast %28 : vector<4x8xf32> to vector<4x8x1xf32>
    %cst_13 = arith.constant 1.000000e+00 : f32
    %30 = vector.broadcast %cst_13 : f32 to vector<4x8x1xf32>
    %31 = arith.divf %30, %29 : vector<4x8x1xf32>
    %32 = vector.broadcast %31 : vector<4x8x1xf32> to vector<4x8x8xf32>
    %33 = arith.mulf %27, %32 : vector<4x8x8xf32>
    %cst_14 = arith.constant dense<0xFF800000> : vector<4xf32>
    %34 = vector.multi_reduction <maximumf>, %22, %cst_14 [1] : vector<4x8xf32> to vector<4xf32>
    %35 = vector.shape_cast %34 : vector<4xf32> to vector<4x1xf32>
    %36 = vector.broadcast %35 : vector<4x1xf32> to vector<4x8xf32>
    %37 = arith.subf %22, %36 : vector<4x8xf32>
    %38 = math.exp %37 : vector<4x8xf32>
    %cst_15 = arith.constant dense<0.000000e+00> : vector<4xf32>
    %39 = vector.multi_reduction <add>, %38, %cst_15 [1] : vector<4x8xf32> to vector<4xf32>
    %40 = vector.shape_cast %39 : vector<4xf32> to vector<4x1xf32>
    %cst_16 = arith.constant 1.000000e+00 : f32
    %41 = vector.broadcast %cst_16 : f32 to vector<4x1xf32>
    %42 = arith.divf %41, %40 : vector<4x1xf32>
    %43 = vector.broadcast %42 : vector<4x1xf32> to vector<4x8xf32>
    %44 = arith.mulf %38, %43 : vector<4x8xf32>
    %45 = vector.shape_cast %44 : vector<4x8xf32> to vector<4x1x8xf32>
    %46 = vector.broadcast %45 : vector<4x1x8xf32> to vector<4x8x8xf32>
    %47 = arith.mulf %33, %46 : vector<4x8x8xf32>
    %48 = vector.shape_cast %47 : vector<4x8x8xf32> to vector<1x4x64xf32>
    %c0_17 = arith.constant 0 : index
    %c0_18 = arith.constant 0 : index
    %c0_19 = arith.constant 0 : index
    %49 = vector.load %arg8[%c0_17, %c0_18, %c0_19] : memref<1x4x64xf32, #tpu.memory_space<vmem>>, vector<1x4x64xf32>
    tpu.vector_store %arg8[%c0_17, %c0_18, %c0_19], %48 {strides = array<i32>} : memref<1x4x64xf32, #tpu.memory_space<vmem>>, vector<1x4x64xf32>,
    "tpu.trace_start"() <{level = 10 : i32, message = "nqk,nkd->nqd"}> : () -> ()
    %cst_20 = arith.constant dense<0.000000e+00> : vector<4x8x8xf32>
    %50 = tpu.matmul %47, %15, %cst_20 {dimension_numbers = #tpu.dot_dimension_numbers<[2], [1], [1], [2], [0, 0, 0, 1, 1, 2], [0], [0]>} : vector<4x8x8xf32>, vector<4x8x8xf32>, vector<4x8x8xf32> -> vector<4x8x8xf32>
    "tpu.trace_stop"() : () -> ()
    %51 = vector.shape_cast %50 : vector<4x8x8xf32> to vector<1x4x8x8xf32>
    %52 = tpu.transpose %51, [0, 2, 1, 3] : vector<1x4x8x8xf32> -> vector<1x8x4x8xf32>
    %53 = vector.shape_cast %52 : vector<1x8x4x8xf32> to vector<8x32xf32>
    %c0_21 = arith.constant 0 : index
    %c0_22 = arith.constant 0 : index
    %54 = vector.load %arg5[%c0_21, %c0_22] : memref<32x32xf32, #tpu.memory_space<vmem>>, vector<32x32xf32>
    %cst_23 = arith.constant dense<0.000000e+00> : vector<8x32xf32>
    %55 = tpu.matmul %53, %54, %cst_23 {dimension_numbers = #tpu.dot_dimension_numbers<[1], [0], [0], [1], [0, 0, 1, 1], [], []>} : vector<8x32xf32>, vector<32x32xf32>, vector<8x32xf32> -> vector<8x32xf32>
    %c0_24 = arith.constant 0 : index
    %c0_25 = arith.constant 0 : index
    %56 = vector.load %arg6[%c0_24, %c0_25] : memref<1x32xf32, #tpu.memory_space<vmem>>, vector<1x32xf32>
    %57 = vector.broadcast %56 : vector<1x32xf32> to vector<8x32xf32>
    %58 = arith.addf %55, %57 : vector<8x32xf32>
    %59 = vector.shape_cast %58 : vector<8x32xf32> to vector<1x8x32xf32>
    %c0_26 = arith.constant 0 : index
    %c0_27 = arith.constant 0 : index
    %c0_28 = arith.constant 0 : index
    %60 = vector.load %arg7[%c0_26, %c0_27, %c0_28] : memref<1x8x32xf32, #tpu.memory_space<vmem>>, vector<1x8x32xf32>
    tpu.vector_store %arg7[%c0_26, %c0_27, %c0_28], %59 {strides = array<i32>} : memref<1x8x32xf32, #tpu.memory_space<vmem>>, vector<1x8x32xf32>,
    return
  }
  func.func @transform_0(%arg0: i32) -> (i32, i32, i32) {
    %c0_i32 = arith.constant 0 : i32
    %c0_i32_0 = arith.constant 0 : i32
    %c0_i32_1 = arith.constant 0 : i32
    return %arg0, %c0_i32, %c0_i32_0 : i32, i32, i32
  }
  func.func @transform_1(%arg0: i32) -> (i32, i32, i32) {
    %c0_i32 = arith.constant 0 : i32
    %c0_i32_0 = arith.constant 0 : i32
    %c0_i32_1 = arith.constant 0 : i32
    return %arg0, %c0_i32, %c0_i32_0 : i32, i32, i32
  }
  func.func @transform_2(%arg0: i32) -> (i32, i32) {
    %c0_i32 = arith.constant 0 : i32
    %c0_i32_0 = arith.constant 0 : i32
    %c0_i32_1 = arith.constant 0 : i32
    return %c0_i32, %c0_i32_0 : i32, i32
  }
  func.func @transform_3(%arg0: i32) -> (i32, i32) {
    %c0_i32 = arith.constant 0 : i32
    %c0_i32_0 = arith.constant 0 : i32
    %c0_i32_1 = arith.constant 0 : i32
    return %c0_i32, %c0_i32_0 : i32, i32
  }
  func.func @transform_4(%arg0: i32) -> (i32, i32) {
    %c0_i32 = arith.constant 0 : i32
    %c0_i32_0 = arith.constant 0 : i32
    %c0_i32_1 = arith.constant 0 : i32
    return %c0_i32, %c0_i32_0 : i32, i32
  }
  func.func @transform_5(%arg0: i32) -> (i32, i32) {
    %c0_i32 = arith.constant 0 : i32
    %c0_i32_0 = arith.constant 0 : i32
    %c0_i32_1 = arith.constant 0 : i32
    return %c0_i32, %c0_i32_0 : i32, i32
  }
  func.func @transform_6(%arg0: i32) -> (i32, i32, i32) {
    %c0_i32 = arith.constant 0 : i32
    %c0_i32_0 = arith.constant 0 : i32
    %c0_i32_1 = arith.constant 0 : i32
    return %arg0, %c0_i32, %c0_i32_0 : i32, i32, i32
  }
  func.func @transform_7(%arg0: i32) -> (i32, i32, i32) {
    %c0_i32 = arith.constant 0 : i32
    %c0_i32_0 = arith.constant 0 : i32
    %c0_i32_1 = arith.constant 0 : i32
    return %arg0, %c0_i32, %c0_i32_0 : i32, i32, i32
  }
}

</mosaic_0001>

<llo_original>
// kernel: tpu_custom_call.1
$region0: #{tpu_custom_call.1}
  #allocation0 [shape = 'u32[]', space=smem, size = 0x4, offset = 0x4, fixed_abs, tag = 'smem constant byte address 0x4 - core index']
  #allocation1 [shape = 'u32[144,128]{1,0:T(1,128)}', space=vmem, size = 0x12000, scoped, tag = 'internal scratch']
  %s0 = inlined_call_operand.hbm [shape: f32[2,8,32], index: 0, kind: input, shape index: {}]
  %s1 = inlined_call_operand.vmem [shape: f32[2,1,8], index: 1, kind: input, shape index: {}]
  %s2 = inlined_call_operand.hbm [shape: f32[32,96], index: 2, kind: input, shape index: {}]
  %s3 = inlined_call_operand.vmem [shape: f32[1,96], index: 3, kind: input, shape index: {}]
  %s4 = inlined_call_operand.hbm [shape: f32[32,32], index: 4, kind: input, shape index: {}]
  %s5 = inlined_call_operand.vmem [shape: f32[1,32], index: 5, kind: input, shape index: {}]
  %s6 = inlined_call_operand.hbm [shape: f32[2,8,32], index: 6, kind: output, shape index: {0}]
  %s7 = inlined_call_operand.hbm [shape: f32[2,4,64], index: 7, kind: output, shape index: {1}]
  %8 = xla_tuple %s6, %s7
  %s9 = sld [smem:[#allocation0]]
  $region77: #{tpu_custom_call.1} parent=0
    _
  %s11 = ssub.s32 1, %s9
  %s12 = scalar_select 0, %s11, %s9
  $region1: #{tpu_custom_call.1} parent=0
    #allocation2 [shape = 'u8[8192]{0}', space=vmem, size = 0x2000, scoped, tag = 'input window, operand 0']
    #allocation3 [shape = 's32[2]{0}', space=sflag, size = 0x8, scoped, tag = 'scoped memory for tpu_custom_call.1']
    #allocation4 [shape = 's32[2]{0}', space=sflag, size = 0x8, scoped, tag = 'scoped memory for tpu_custom_call.1']
    #allocation5 [shape = 'u8[16384]{0}', space=vmem, size = 0x4000, scoped, tag = 'input window, operand 2, single buffered']
    #allocation6 [shape = 's32[1]{0}', space=sflag, size = 0x4, scoped, tag = 'scoped memory for tpu_custom_call.1']
    #allocation7 [shape = 'u8[16384]{0}', space=vmem, size = 0x4000, scoped, tag = 'input window, operand 4, single buffered']
    #allocation8 [shape = 'u8[8192]{0}', space=vmem, size = 0x2000, scoped, tag = 'output window, operand 0']
    #allocation9 [shape = 'u8[4096]{0}', space=vmem, size = 0x1000, scoped, tag = 'output window, operand 1']
    #allocation10 [shape = 's32[2]{0}', space=sflag, size = 0x8, scoped, tag = 'scoped memory for tpu_custom_call.1']
    %13 = vsyncpa [#allocation3], 0
    %s14 = scalar_lea.sflag [#allocation3], 1
    %15 = vsyncpa %s14, 0
    %16 = vsyncpa [#allocation6], 0
    %17 = vsyncpa [#allocation4], 0
    %s18 = scalar_lea.sflag [#allocation4], 1
    %19 = vsyncpa %s18, 0
    %20 = vsyncpa [#allocation10], 0
    %s21 = scalar_lea.sflag [#allocation10], 1
    %22 = vsyncpa %s21, 0
    loop: start=0, step=1, limit=4
    $region2: #{tpu_custom_call.1} parent=1 // loop_pre_header
      _
    $region3: #{tpu_custom_call.1} parent=1 // loop_header
      %s24 = sphi 0, %s28
      %p25 = scmp.ge.s32.totalorder %s24, 4
      %s34 = sphi 0, %s36
      %s37 = sphi 0, %s34
      %s38 = sphi 0, %s37
      %s54 = sphi 0, %s38
      %s60 = sphi 0, %s62
      %s63 = sphi 0, %s60
      %s64 = sphi 0, %s63
      %s80 = sphi 0, %s64
      %s84 = sphi 0, %s84
      %s86 = sphi 0, %s84
      %s87 = sphi 0, %s86
      %s101 = sphi 0, %s87
      %s105 = sphi 0, %s105
      %s107 = sphi 0, %s105
      %s108 = sphi 0, %s107
      %s122 = sphi 0, %s108
      %s126 = sphi 0, %s126
      %s128 = sphi 0, %s126
      %s129 = sphi 0, %s128
      %s143 = sphi 0, %s129
      %s147 = sphi 0, %s147
      %s149 = sphi 0, %s147
      %s150 = sphi 0, %s149
      %s164 = sphi 0, %s150
      %s170 = sphi 0, %s172
      %s173 = sphi 0, %s170
      %s174 = sphi 0, %s173
      %s190 = sphi 0, %s174
      %s196 = sphi 0, %s198
      %s199 = sphi 0, %s196
      %s200 = sphi 0, %s199
      %s216 = sphi 0, %s200
    $region4: #{tpu_custom_call.1} parent=1 // loop_header_branch
      %27 = sbr.rel (%p25) target = $region8
    $region5: #{tpu_custom_call.1} parent=1 // loop_body
      %s29 = ssub.s32 %s24, 1
      %s30 = ssub.s32 %s24, 2
      %s31 = sadd.s32 %s24, 1
      %s32 = ssub.s32 %s24, %s31
      %p33 = scmp.eq.s32.totalorder %s32, 0
      %s35 = sadd.s32 %s34, 1
      %s36 = scalar_select %p33, %s34, %s35
      %p39 = pneg %p33
      %p40 = scmp.eq.s32.totalorder %s24, 1
      %p41 = por %p39, %p40
      %p42 = scmp.ne.s32.totalorder %s34, %s37
      %p43 = scmp.eq.s32.totalorder %s24, 0
      %p44 = por %p42, %p43
      %p45 = scmp.ne.s32.totalorder %s34, %s37
      %p46 = scmp.eq.s32.totalorder %s29, 1
      %p47 = por %p45, %p46
      %p48 = scmp.ne.s32.totalorder %s37, %s38
      %p49 = scmp.eq.s32.totalorder %s29, 0
      %p50 = por %p48, %p49
      %p51 = scmp.ne.s32.totalorder %s37, %s38
      %p52 = scmp.eq.s32.totalorder %s30, 1
      %p53 = por %p51, %p52
      %p55 = scmp.ne.s32.totalorder %s38, %s54
      %p56 = scmp.eq.s32.totalorder %s30, 0
      %p57 = por %p55, %p56
      %s58 = ssub.s32 %s24, %s31
      %p59 = scmp.eq.s32.totalorder %s58, 0
      %s61 = sadd.s32 %s60, 1
      %s62 = scalar_select %p59, %s60, %s61
      %p65 = pneg %p59
      %p66 = scmp.eq.s32.totalorder %s24, 1
      %p67 = por %p65, %p66
      %p68 = scmp.ne.s32.totalorder %s60, %s63
      %p69 = scmp.eq.s32.totalorder %s24, 0
      %p70 = por %p68, %p69
      %p71 = scmp.ne.s32.totalorder %s60, %s63
      %p72 = scmp.eq.s32.totalorder %s29, 1
      %p73 = por %p71, %p72
      %p74 = scmp.ne.s32.totalorder %s63, %s64
      %p75 = scmp.eq.s32.totalorder %s29, 0
      %p76 = por %p74, %p75
      %p77 = scmp.ne.s32.totalorder %s63, %s64
      %p78 = scmp.eq.s32.totalorder %s30, 1
      %p79 = por %p77, %p78
      %p81 = scmp.ne.s32.totalorder %s64, %s80
      %p82 = scmp.eq.s32.totalorder %s30, 0
      %p83 = por %p81, %p82
      %s85 = sadd.s32 %s84, 1
      %p88 = scmp.eq.s32.totalorder %s24, 1
      %p89 = scmp.ne.s32.totalorder %s84, %s86
      %p90 = scmp.eq.s32.totalorder %s24, 0
      %p91 = por %p89, %p90
      %p92 = scmp.ne.s32.totalorder %s84, %s86
      %p93 = scmp.eq.s32.totalorder %s29, 1
      %p94 = por %p92, %p93
      %p95 = scmp.ne.s32.totalorder %s86, %s87
      %p96 = scmp.eq.s32.totalorder %s29, 0
      %p97 = por %p95, %p96
      %p98 = scmp.ne.s32.totalorder %s86, %s87
      %p99 = scmp.eq.s32.totalorder %s30, 1
      %p100 = por %p98, %p99
      %p102 = scmp.ne.s32.totalorder %s87, %s101
      %p103 = scmp.eq.s32.totalorder %s30, 0
      %p104 = por %p102, %p103
      %s106 = sadd.s32 %s105, 1
      %p109 = scmp.eq.s32.totalorder %s24, 1
      %p110 = scmp.ne.s32.totalorder %s105, %s107
      %p111 = scmp.eq.s32.totalorder %s24, 0
      %p112 = por %p110, %p111
      %p113 = scmp.ne.s32.totalorder %s105, %s107
      %p114 = scmp.eq.s32.totalorder %s29, 1
      %p115 = por %p113, %p114
      %p116 = scmp.ne.s32.totalorder %s107, %s108
      %p117 = scmp.eq.s32.totalorder %s29, 0
      %p118 = por %p116, %p117
      %p119 = scmp.ne.s32.totalorder %s107, %s108
      %p120 = scmp.eq.s32.totalorder %s30, 1
      %p121 = por %p119, %p120
      %p123 = scmp.ne.s32.totalorder %s108, %s122
      %p124 = scmp.eq.s32.totalorder %s30, 0
      %p125 = por %p123, %p124
      %s127 = sadd.s32 %s126, 1
      %p130 = scmp.eq.s32.totalorder %s24, 1
      %p131 = scmp.ne.s32.totalorder %s126, %s128
      %p132 = scmp.eq.s32.totalorder %s24, 0
      %p133 = por %p131, %p132
      %p134 = scmp.ne.s32.totalorder %s126, %s128
      %p135 = scmp.eq.s32.totalorder %s29, 1
      %p136 = por %p134, %p135
      %p137 = scmp.ne.s32.totalorder %s128, %s129
      %p138 = scmp.eq.s32.totalorder %s29, 0
      %p139 = por %p137, %p138
      %p140 = scmp.ne.s32.totalorder %s128, %s129
      %p141 = scmp.eq.s32.totalorder %s30, 1
      %p142 = por %p140, %p141
      %p144 = scmp.ne.s32.totalorder %s129, %s143
      %p145 = scmp.eq.s32.totalorder %s30, 0
      %p146 = por %p144, %p145
      %s148 = sadd.s32 %s147, 1
      %p151 = scmp.eq.s32.totalorder %s24, 1
      %p152 = scmp.ne.s32.totalorder %s147, %s149
      %p153 = scmp.eq.s32.totalorder %s24, 0
      %p154 = por %p152, %p153
      %p155 = scmp.ne.s32.totalorder %s147, %s149
      %p156 = scmp.eq.s32.totalorder %s29, 1
      %p157 = por %p155, %p156
      %p158 = scmp.ne.s32.totalorder %s149, %s150
      %p159 = scmp.eq.s32.totalorder %s29, 0
      %p160 = por %p158, %p159
      %p161 = scmp.ne.s32.totalorder %s149, %s150
      %p162 = scmp.eq.s32.totalorder %s30, 1
      %p163 = por %p161, %p162
      %p165 = scmp.ne.s32.totalorder %s150, %s164
      %p166 = scmp.eq.s32.totalorder %s30, 0
      %p167 = por %p165, %p166
      %s168 = ssub.s32 %s24, %s31
      %p169 = scmp.eq.s32.totalorder %s168, 0
      %s171 = sadd.s32 %s170, 1
      %s172 = scalar_select %p169, %s170, %s171
      %p175 = pneg %p169
      %p176 = scmp.eq.s32.totalorder %s24, 1
      %p177 = por %p175, %p176
      %p178 = scmp.ne.s32.totalorder %s170, %s173
      %p179 = scmp.eq.s32.totalorder %s24, 0
      %p180 = por %p178, %p179
      %p181 = scmp.ne.s32.totalorder %s170, %s173
      %p182 = scmp.eq.s32.totalorder %s29, 1
      %p183 = por %p181, %p182
      %p184 = scmp.ne.s32.totalorder %s173, %s174
      %p185 = scmp.eq.s32.totalorder %s29, 0
      %p186 = por %p184, %p185
      %p187 = scmp.ne.s32.totalorder %s173, %s174
      %p188 = scmp.eq.s32.totalorder %s30, 1
      %p189 = por %p187, %p188
      %p191 = scmp.ne.s32.totalorder %s174, %s190
      %p192 = scmp.eq.s32.totalorder %s30, 0
      %p193 = por %p191, %p192
      %s194 = ssub.s32 %s24, %s31
      %p195 = scmp.eq.s32.totalorder %s194, 0
      %s197 = sadd.s32 %s196, 1
      %s198 = scalar_select %p195, %s196, %s197
      %p201 = pneg %p195
      %p202 = scmp.eq.s32.totalorder %s24, 1
      %p203 = por %p201, %p202
      %p204 = scmp.ne.s32.totalorder %s196, %s199
      %p205 = scmp.eq.s32.totalorder %s24, 0
      %p206 = por %p204, %p205
      %p207 = scmp.ne.s32.totalorder %s196, %s199
      %p208 = scmp.eq.s32.totalorder %s29, 1
      %p209 = por %p207, %p208
      %p210 = scmp.ne.s32.totalorder %s199, %s200
      %p211 = scmp.eq.s32.totalorder %s29, 0
      %p212 = por %p210, %p211
      %p213 = scmp.ne.s32.totalorder %s199, %s200
      %p214 = scmp.eq.s32.totalorder %s30, 1
      %p215 = por %p213, %p214
      %p217 = scmp.ne.s32.totalorder %s200, %s216
      %p218 = scmp.eq.s32.totalorder %s30, 0
      %p219 = por %p217, %p218
      %p220 = scmp.le.s32.totalorder 1, %s24
      %p221 = scmp.lt.s32.totalorder %s24, 3
      %p222 = pnand %p220, %p221
      %p223 = pneg %p222
      // Predicated region
      $region9: #{tpu_custom_call.1} parent=5 // pred_check
        _
      $region10: #{tpu_custom_call.1} parent=5 // pred_check_branch
        %225 = sbr.rel (%p222) target = $region12
      $region11: #{tpu_custom_call.1} parent=5 // pred_region
        %s226 = ssub.s32 %s24, 1
        // Predicated region
        $region13: #{tpu_custom_call.1} parent=11 // pred_check
          %p227 = pneg %p97
        $region14: #{tpu_custom_call.1} parent=11 // pred_check_branch
          %229 = sbr.rel (%p227) target = $region16
        $region15: #{tpu_custom_call.1} parent=11 // pred_region
          %s231 = ssub.s32 512, 512
          %232 = vsyncadd [#allocation6], %s231
          %s233 = sshll.u32 [#allocation5], 4
          %s234 = int_to_ptr.vmem [resolvable:$true] %s233
          %239 = dma.hbm_to_vmem [thread:$0]  %s2, 512, %s234, [#allocation6], 128, 128, 8
        $region16: #{tpu_custom_call.1} parent=11 // pred_fallthru
          _
        // Predicated region
        $region17: #{tpu_custom_call.1} parent=11 // pred_check
          %p240 = pneg %p118
        $region18: #{tpu_custom_call.1} parent=11 // pred_check_branch
          %242 = sbr.rel (%p240) target = $region20
        $region19: #{tpu_custom_call.1} parent=11 // pred_region
          _
        $region20: #{tpu_custom_call.1} parent=11 // pred_fallthru
          _
        // Predicated region
        $region21: #{tpu_custom_call.1} parent=11 // pred_check
          %p243 = pneg %p139
        $region22: #{tpu_custom_call.1} parent=11 // pred_check_branch
          %245 = sbr.rel (%p243) target = $region24
        $region23: #{tpu_custom_call.1} parent=11 // pred_region
          %s247 = ssub.s32 512, 512
          %248 = vsyncadd [#allocation6], %s247
          %s249 = sshll.u32 [#allocation7], 4
          %s250 = int_to_ptr.vmem [resolvable:$true] %s249
          %255 = dma.hbm_to_vmem [thread:$0]  %s4, 512, %s250, [#allocation6], 128, 128, 8
        $region24: #{tpu_custom_call.1} parent=11 // pred_fallthru
          _
        // Predicated region
        $region25: #{tpu_custom_call.1} parent=11 // pred_check
          %p256 = pneg %p160
        $region26: #{tpu_custom_call.1} parent=11 // pred_check_branch
          %258 = sbr.rel (%p256) target = $region28
        $region27: #{tpu_custom_call.1} parent=11 // pred_region
          _
        $region28: #{tpu_custom_call.1} parent=11 // pred_fallthru
          _
      $region12: #{tpu_custom_call.1} parent=5 // pred_fallthru
        _
      %p259 = scmp.lt.s32.totalorder %s24, 2
      // Predicated region
      $region29: #{tpu_custom_call.1} parent=5 // pred_check
        %p260 = pneg %p259
      $region30: #{tpu_custom_call.1} parent=5 // pred_check_branch
        %262 = sbr.rel (%p260) target = $region32
      $region31: #{tpu_custom_call.1} parent=5 // pred_region
        // Predicated region
        $region33: #{tpu_custom_call.1} parent=31 // pred_check
          %p263 = pneg %p44
        $region34: #{tpu_custom_call.1} parent=31 // pred_check_branch
          %265 = sbr.rel (%p263) target = $region36
        $region35: #{tpu_custom_call.1} parent=31 // pred_region
          %s266 = sand.u32 %s34, 1
          %s267 = scalar_lea.sflag [#allocation3], %s266
          %s268 = sand.u32 %s34, 1
          %s269 = smul.addr %s268, 8
          %s270 = scalar_lea.vmem [#allocation2], %s269
          %s272 = ssub.s32 128, 128
          %273 = vsyncadd %s267, %s272
          %s274 = smul.addr %s24, 128
          %s275 = scalar_lea.hbm %s0, %s274
          %s277 = sshll.u32 %s270, 4
          %s278 = int_to_ptr.vmem [resolvable:$true] %s277
          %280 = dma.hbm_to_vmem [thread:$0]  %s275, 128, %s278, %s267
        $region36: #{tpu_custom_call.1} parent=31 // pred_fallthru
          _
        // Predicated region
        $region37: #{tpu_custom_call.1} parent=31 // pred_check
          %p281 = pneg %p70
        $region38: #{tpu_custom_call.1} parent=31 // pred_check_branch
          %283 = sbr.rel (%p281) target = $region40
        $region39: #{tpu_custom_call.1} parent=31 // pred_region
          %p284 = scmp.lt.s32.totalorder %s24, 1
          %s285 = scalar_select %p284, %s24, 1
          %s286 = scalar_lea.vmem %s1, %s285
        $region40: #{tpu_custom_call.1} parent=31 // pred_fallthru
          _
      $region32: #{tpu_custom_call.1} parent=5 // pred_fallthru
        _
      %p287 = scmp.le.s32.totalorder 1, %s24
      %p288 = scmp.lt.s32.totalorder %s24, 3
      %p289 = pnand %p287, %p288
      %p290 = pneg %p289
      // Predicated region
      $region41: #{tpu_custom_call.1} parent=5 // pred_check
        _
      $region42: #{tpu_custom_call.1} parent=5 // pred_check_branch
        %292 = sbr.rel (%p289) target = $region44
      $region43: #{tpu_custom_call.1} parent=5 // pred_region
        %s293 = ssub.s32 %s24, 1
        %s294 = sand.u32 %s37, 1
        %s295 = scalar_lea.sflag [#allocation3], %s294
        %s296 = sand.u32 %s37, 1
        %s297 = smul.addr %s296, 8
        %s298 = scalar_lea.vmem [#allocation2], %s297
        // Predicated region
        $region45: #{tpu_custom_call.1} parent=43 // pred_check
          %p299 = pneg %p50
        $region46: #{tpu_custom_call.1} parent=43 // pred_check_branch
          %301 = sbr.rel (%p299) target = $region48
        $region47: #{tpu_custom_call.1} parent=43 // pred_region
          %302 = dma.done %s295, 128
        $region48: #{tpu_custom_call.1} parent=43 // pred_fallthru
          _
        // Predicated region
        $region49: #{tpu_custom_call.1} parent=43 // pred_check
          %p303 = pneg %p97
        $region50: #{tpu_custom_call.1} parent=43 // pred_check_branch
          %305 = sbr.rel (%p303) target = $region52
        $region51: #{tpu_custom_call.1} parent=43 // pred_region
          %306 = dma.done [#allocation6], 512
        $region52: #{tpu_custom_call.1} parent=43 // pred_fallthru
          _
        // Predicated region
        $region53: #{tpu_custom_call.1} parent=43 // pred_check
          %p307 = pneg %p139
        $region54: #{tpu_custom_call.1} parent=43 // pred_check_branch
          %309 = sbr.rel (%p307) target = $region56
        $region55: #{tpu_custom_call.1} parent=43 // pred_region
          %310 = dma.done [#allocation6], 512
        $region56: #{tpu_custom_call.1} parent=43 // pred_fallthru
          _
        %s311 = sand.u32 %s37, 1
        %s312 = scalar_lea.sflag [#allocation3], %s311
        %s313 = sand.u32 %s37, 1
        %s314 = smul.addr %s313, 8
        %s315 = scalar_lea.vmem [#allocation2], %s314
        %p316 = pneg %p50
        %p317 = pneg %p47
        %p318 = scmp.lt.s32.totalorder %s29, 1
        %s319 = scalar_select %p318, %s29, 1
        %s320 = scalar_lea.vmem %s1, %s319
        %p321 = pneg %p76
        %p322 = pneg %p73
        %p323 = pneg %p97
        %p324 = pneg %p94
        %p325 = pneg %p118
        %p326 = pneg %p115
        %p327 = pneg %p139
        %p328 = pneg %p136
        %p329 = pneg %p160
        %p330 = pneg %p157
        %p331 = pneg %p186
        %p332 = pneg %p183
        %s333 = sand.u32 %s173, 1
        %s334 = scalar_lea.sflag [#allocation4], %s333
        %s335 = sand.u32 %s173, 1
        %s336 = smul.addr %s335, 8
        %s337 = scalar_lea.vmem [#allocation8], %s336
        %p338 = pneg %p212
        %p339 = pneg %p209
        %s340 = sand.u32 %s199, 1
        %s341 = scalar_lea.sflag [#allocation10], %s340
        %s342 = sand.u32 %s199, 1
        %s343 = smul.addr %s342, 4
        %s344 = scalar_lea.vmem [#allocation9], %s343
        %p345 = scmp.lt.s32.totalorder %s29, 1
        %s346 = scalar_select %p345, %s29, 1
        %s347 = scalar_lea.vmem %s1, %s346
        %v348 = vld [vmem:[%s298] sm:$0xff]
        %v349 = vld [vmem:[%s347] sm:$0x1]
        %v350 = vld [vmem:[#allocation5] sm:$0xff]
        %v351 = vld [vmem:[#allocation5 + $0x8] sm:$0xff]
        %v352 = vld [vmem:[#allocation5 + $0x10] sm:$0xff]
        %v353 = vld [vmem:[#allocation5 + $0x18] sm:$0xff]
        %v354 = vld [vmem:[%s3] sm:$0x1]
        %v356 = vlaneseq
        %v357 = vshrl.u32 %v356, 7
        %v358 = vsub.s32 0, %v357
        %v359 = vrot.slane %v354, %v358
        %vm361 = vcmask 261120
        %v363 = vsel %vm361, %v348, 0
        %365 = vmatprep.subr.mxu0 0.0
        %366 = vmatpush1.msra.mxu0 %v350
        %367 = vmatprep.subr.mxu0 0.0
        %368 = vmatpush1.msra.mxu0 %v351
        %369 = vmatprep.subr.mxu0 0.0
        %370 = vmatpush1.msra.mxu0 %v352
        %371 = vmatprep.subr.mxu0 0.0
        %372 = vmatpush1.msra.mxu0 %v353
        %373 = vmatprep.subr.mxu0 0.0
        %374 = vmatpush1.msra.mxu0 0.0
        %375 = vmatprep.subr.mxu0 0.0
        %376 = vmatpush1.msra.mxu0 0.0
        %377 = vmatprep.subr.mxu0 0.0
        %378 = vmatpush1.msra.mxu0 0.0
        %379 = vmatprep.subr.mxu0 0.0
        %380 = vmatpush1.msra.mxu0 0.0
        %381 = vmatprep.subr.mxu0 0.0
        %382 = vmatpush1.msra.mxu0 0.0
        %383 = vmatprep.subr.mxu0 0.0
        %384 = vmatpush1.msra.mxu0 0.0
        %385 = vmatprep.subr.mxu0 0.0
        %386 = vmatpush1.msra.mxu0 0.0
        %387 = vmatprep.subr.mxu0 0.0
        %388 = vmatpush1.msra.mxu0 0.0
        %389 = vmatprep.subr.mxu0 0.0
        %390 = vmatpush1.msra.mxu0 0.0
        %391 = vmatprep.subr.mxu0 0.0
        %392 = vmatpush1.msra.mxu0 0.0
        %393 = vmatprep.subr.mxu0 0.0
        %394 = vmatpush1.msra.mxu0 0.0
        %395 = vmatprep.subr.mxu0 0.0
        %396 = vmatpush1.msra.mxu0 0.0
        %397 = vmatprep.subr.mxu0 0.0
        %398 = vmatpush1.msra.mxu0 0.0
        %399 = vmatprep.subr.mxu0 0.0
        %400 = vmatpush1.msra.mxu0 0.0
        %401 = vmatprep.subr.mxu0 0.0
        %402 = vmatpush1.msra.mxu0 0.0
        %403 = vmatprep.subr.mxu0 0.0
        %404 = vmatpush1.msra.mxu0 0.0
        %405 = vmatprep.subr.mxu0 0.0
        %406 = vmatpush1.msra.mxu0 0.0
        %407 = vmatprep.subr.mxu0 0.0
        %408 = vmatpush1.msra.mxu0 0.0
        %409 = vmatprep.subr.mxu0 0.0
        %410 = vmatpush1.msra.mxu0 0.0
        %411 = vmatprep.subr.mxu0 0.0
        %412 = vmatpush1.msra.mxu0 0.0
        %413 = vmatprep.subr.mxu0 0.0
        %414 = vmatpush1.msra.mxu0 0.0
        %415 = vmatprep.subr.mxu0 0.0
        %416 = vmatpush1.msra.mxu0 0.0
        %417 = vmatprep.subr.mxu0 0.0
        %418 = vmatpush1.msra.mxu0 0.0
        %419 = vmatprep.subr.mxu0 0.0
        %420 = vmatpush1.msra.mxu0 0.0
        %421 = vmatprep.subr.mxu0 0.0
        %422 = vmatpush1.msra.mxu0 0.0
        %423 = vmatprep.subr.mxu0 0.0
        %424 = vmatpush1.msra.mxu0 0.0
        %425 = vmatprep.subr.mxu0 0.0
        %426 = vmatpush1.msra.mxu0 0.0
        %427 = vmatprep.subr.mxu0 0.0
        %428 = vmatpush1.msra.mxu0 0.0
        %429 = vmatprep.mubr.f32.mxu0 0.0
        %430 = vmatmul.mubr.f32.gmra.mrb[0].mxu0 %v363
        %v431 = vpop.f32.mrb[0].mxu0
        %v432 = vadd.f32 %v359, %v431
        %v433 = vpop.f32.mrb[0].mxu0
        %434 = vdwg.mxu0
        %436 = vrot.lane.b32.xlu0 %v432, 120
        %v437 = vpop.permute.xlu0 %436
        %439 = vrot.lane.b32.xlu0 %v432, 112
        %v440 = vpop.permute.xlu0 %439
        %442 = vrot.lane.b32.xlu0 %v432, 104
        %v443 = vpop.permute.xlu0 %442
        %445 = vrot.lane.b32.xlu0 %v432, 96
        %v446 = vpop.permute.xlu0 %445
        %448 = vrot.lane.b32.xlu0 %v432, 88
        %v449 = vpop.permute.xlu0 %448
        %451 = vrot.lane.b32.xlu0 %v432, 80
        %v452 = vpop.permute.xlu0 %451
        %454 = vrot.lane.b32.xlu0 %v432, 72
        %v455 = vpop.permute.xlu0 %454
        %457 = vrot.lane.b32.xlu0 %v432, 64
        %v458 = vpop.permute.xlu0 %457
        %460 = vrot.lane.b32.xlu0 %v432, 56
        %v461 = vpop.permute.xlu0 %460
        %463 = vrot.lane.b32.xlu0 %v432, 48
        %v464 = vpop.permute.xlu0 %463
        %466 = vrot.lane.b32.xlu0 %v432, 40
        %v467 = vpop.permute.xlu0 %466
        %v469 = vcombine.low %v432, %v440
        %v470 = vcombine.high %v432, %v440
        %v472 = vunpack.c.l.s4 1983009808
        %v473 = vunpack.c.0.s8 %v472
        %v474 = vlaneseq
        %v475 = vshrl.u32 %v474, 7
        %v476 = vsub.s32 %v473, %v475
        %v477 = vrot.slane %v469, %v476
        %v479 = vunpack.c.l.s4 1983009808
        %v480 = vunpack.c.0.s8 %v479
        %v481 = vlaneseq
        %v482 = vshrl.u32 %v481, 7
        %v483 = vsub.s32 %v480, %v482
        %v484 = vrot.slane %v470, %v483
        %v485 = vcombine.low %v437, %v443
        %v486 = vcombine.high %v437, %v443
        %v488 = vunpack.c.l.s4 1983009808
        %v489 = vunpack.c.0.s8 %v488
        %v490 = vlaneseq
        %v491 = vshrl.u32 %v490, 7
        %v492 = vsub.s32 %v489, %v491
        %v493 = vrot.slane %v485, %v492
        %v495 = vunpack.c.l.s4 1983009808
        %v496 = vunpack.c.0.s8 %v495
        %v497 = vlaneseq
        %v498 = vshrl.u32 %v497, 7
        %v499 = vsub.s32 %v496, %v498
        %v500 = vrot.slane %v486, %v499
        %v501 = vcombine.low %v446, %v452
        %v502 = vcombine.high %v446, %v452
        %v504 = vunpack.c.l.s4 1983009808
        %v505 = vunpack.c.0.s8 %v504
        %v506 = vlaneseq
        %v507 = vshrl.u32 %v506, 7
        %v508 = vsub.s32 %v505, %v507
        %v509 = vrot.slane %v501, %v508
        %v511 = vunpack.c.l.s4 1983009808
        %v512 = vunpack.c.0.s8 %v511
        %v513 = vlaneseq
        %v514 = vshrl.u32 %v513, 7
        %v515 = vsub.s32 %v512, %v514
        %v516 = vrot.slane %v502, %v515
        %v517 = vcombine.low %v449, %v455
        %v518 = vcombine.high %v449, %v455
        %v520 = vunpack.c.l.s4 1983009808
        %v521 = vunpack.c.0.s8 %v520
        %v522 = vlaneseq
        %v523 = vshrl.u32 %v522, 7
        %v524 = vsub.s32 %v521, %v523
        %v525 = vrot.slane %v517, %v524
        %v527 = vunpack.c.l.s4 1983009808
        %v528 = vunpack.c.0.s8 %v527
        %v529 = vlaneseq
        %v530 = vshrl.u32 %v529, 7
        %v531 = vsub.s32 %v528, %v530
        %v532 = vrot.slane %v518, %v531
        %v533 = vcombine.low %v477, %v493
        %v534 = vcombine.high %v477, %v493
        %v536 = vunpack.c.l.s4 1934713408
        %v537 = vunpack.c.0.s8 %v536
        %v538 = vlaneseq
        %v539 = vshrl.u32 %v538, 7
        %v540 = vsub.s32 %v537, %v539
        %v541 = vrot.slane %v533, %v540
        %v543 = vunpack.c.l.s4 1934713408
        %v544 = vunpack.c.0.s8 %v543
        %v545 = vlaneseq
        %v546 = vshrl.u32 %v545, 7
        %v547 = vsub.s32 %v544, %v546
        %v548 = vrot.slane %v534, %v547
        %v549 = vcombine.low %v484, %v500
        %v550 = vcombine.high %v484, %v500
        %v552 = vunpack.c.l.s4 1934713408
        %v553 = vunpack.c.0.s8 %v552
        %v554 = vlaneseq
        %v555 = vshrl.u32 %v554, 7
        %v556 = vsub.s32 %v553, %v555
        %v557 = vrot.slane %v549, %v556
        %v559 = vunpack.c.l.s4 1934713408
        %v560 = vunpack.c.0.s8 %v559
        %v561 = vlaneseq
        %v562 = vshrl.u32 %v561, 7
        %v563 = vsub.s32 %v560, %v562
        %v564 = vrot.slane %v550, %v563
        %v565 = vcombine.low %v509, %v525
        %v566 = vcombine.high %v509, %v525
        %v568 = vunpack.c.l.s4 1934713408
        %v569 = vunpack.c.0.s8 %v568
        %v570 = vlaneseq
        %v571 = vshrl.u32 %v570, 7
        %v572 = vsub.s32 %v569, %v571
        %v573 = vrot.slane %v565, %v572
        %v575 = vunpack.c.l.s4 1934713408
        %v576 = vunpack.c.0.s8 %v575
        %v577 = vlaneseq
        %v578 = vshrl.u32 %v577, 7
        %v579 = vsub.s32 %v576, %v578
        %v580 = vrot.slane %v566, %v579
        %v581 = vcombine.low %v516, %v532
        %v582 = vcombine.high %v516, %v532
        %v584 = vunpack.c.l.s4 1934713408
        %v585 = vunpack.c.0.s8 %v584
        %v586 = vlaneseq
        %v587 = vshrl.u32 %v586, 7
        %v588 = vsub.s32 %v585, %v587
        %v589 = vrot.slane %v581, %v588
        %v591 = vunpack.c.l.s4 1934713408
        %v592 = vunpack.c.0.s8 %v591
        %v593 = vlaneseq
        %v594 = vshrl.u32 %v593, 7
        %v595 = vsub.s32 %v592, %v594
        %v596 = vrot.slane %v582, %v595
        %v597 = vcombine.low %v541, %v573
        %v598 = vcombine.high %v541, %v573
        %v599 = vcombine.low %v548, %v580
        %v600 = vcombine.high %v548, %v580
        %v601 = vcombine.low %v557, %v589
        %v602 = vcombine.high %v557, %v589
        %v603 = vcombine.low %v564, %v596
        %v604 = vcombine.high %v564, %v596
        %v605 = vcombine.low %v458, %v464
        %v606 = vcombine.high %v458, %v464
        %v608 = vunpack.c.l.s4 1983009808
        %v609 = vunpack.c.0.s8 %v608
        %v610 = vlaneseq
        %v611 = vshrl.u32 %v610, 7
        %v612 = vsub.s32 %v609, %v611
        %v613 = vrot.slane %v605, %v612
        %v615 = vunpack.c.l.s4 1983009808
        %v616 = vunpack.c.0.s8 %v615
        %v617 = vlaneseq
        %v618 = vshrl.u32 %v617, 7
        %v619 = vsub.s32 %v616, %v618
        %v620 = vrot.slane %v606, %v619
        %v621 = vcombine.low %v461, %v467
        %v622 = vcombine.high %v461, %v467
        %v624 = vunpack.c.l.s4 1983009808
        %v625 = vunpack.c.0.s8 %v624
        %v626 = vlaneseq
        %v627 = vshrl.u32 %v626, 7
        %v628 = vsub.s32 %v625, %v627
        %v629 = vrot.slane %v621, %v628
        %v631 = vunpack.c.l.s4 1983009808
        %v632 = vunpack.c.0.s8 %v631
        %v633 = vlaneseq
        %v634 = vshrl.u32 %v633, 7
        %v635 = vsub.s32 %v632, %v634
        %v636 = vrot.slane %v622, %v635
        %v637 = vcombine.low %v613, %v629
        %v638 = vcombine.high %v613, %v629
        %v640 = vunpack.c.l.s4 1934713408
        %v641 = vunpack.c.0.s8 %v640
        %v642 = vlaneseq
        %v643 = vshrl.u32 %v642, 7
        %v644 = vsub.s32 %v641, %v643
        %v645 = vrot.slane %v637, %v644
        %v647 = vunpack.c.l.s4 1934713408
        %v648 = vunpack.c.0.s8 %v647
        %v649 = vlaneseq
        %v650 = vshrl.u32 %v649, 7
        %v651 = vsub.s32 %v648, %v650
        %v652 = vrot.slane %v638, %v651
        %v653 = vcombine.low %v620, %v636
        %v654 = vcombine.high %v620, %v636
        %v656 = vunpack.c.l.s4 1934713408
        %v657 = vunpack.c.0.s8 %v656
        %v658 = vlaneseq
        %v659 = vshrl.u32 %v658, 7
        %v660 = vsub.s32 %v657, %v659
        %v661 = vrot.slane %v653, %v660
        %v663 = vunpack.c.l.s4 1934713408
        %v664 = vunpack.c.0.s8 %v663
        %v665 = vlaneseq
        %v666 = vshrl.u32 %v665, 7
        %v667 = vsub.s32 %v664, %v666
        %v668 = vrot.slane %v654, %v667
        %v669 = vcombine.high %v645, 0.0
        %v670 = vcombine.high %v652, 0.0
        %v671 = vcombine.high %v661, 0.0
        %v672 = vcombine.high %v668, 0.0
        %v673 = vcombine.low %v597, %v599
        %v674 = vcombine.high %v597, %v599
        %v676 = vunpack.c.l.s4 1983009808
        %v677 = vunpack.c.0.s8 %v676
        %v678 = vlaneseq
        %v679 = vshrl.u32 %v678, 7
        %v680 = vsub.s32 %v677, %v679
        %v681 = vrot.slane %v673, %v680
        %v683 = vunpack.c.l.s4 1983009808
        %v684 = vunpack.c.0.s8 %v683
        %v685 = vlaneseq
        %v686 = vshrl.u32 %v685, 7
        %v687 = vsub.s32 %v684, %v686
        %v688 = vrot.slane %v674, %v687
        %v689 = vcombine.low %v598, %v600
        %v690 = vcombine.high %v598, %v600
        %v692 = vunpack.c.l.s4 1983009808
        %v693 = vunpack.c.0.s8 %v692
        %v694 = vlaneseq
        %v695 = vshrl.u32 %v694, 7
        %v696 = vsub.s32 %v693, %v695
        %v697 = vrot.slane %v689, %v696
        %v699 = vunpack.c.l.s4 1983009808
        %v700 = vunpack.c.0.s8 %v699
        %v701 = vlaneseq
        %v702 = vshrl.u32 %v701, 7
        %v703 = vsub.s32 %v700, %v702
        %v704 = vrot.slane %v690, %v703
        %v705 = vcombine.low %v601, %v603
        %v706 = vcombine.high %v601, %v603
        %v708 = vunpack.c.l.s4 1983009808
        %v709 = vunpack.c.0.s8 %v708
        %v710 = vlaneseq
        %v711 = vshrl.u32 %v710, 7
        %v712 = vsub.s32 %v709, %v711
        %v713 = vrot.slane %v705, %v712
        %v715 = vunpack.c.l.s4 1983009808
        %v716 = vunpack.c.0.s8 %v715
        %v717 = vlaneseq
        %v718 = vshrl.u32 %v717, 7
        %v719 = vsub.s32 %v716, %v718
        %v720 = vrot.slane %v706, %v719
        %v721 = vcombine.low %v602, %v604
        %v722 = vcombine.high %v602, %v604
        %v724 = vunpack.c.l.s4 1983009808
        %v725 = vunpack.c.0.s8 %v724
        %v726 = vlaneseq
        %v727 = vshrl.u32 %v726, 7
        %v728 = vsub.s32 %v725, %v727
        %v729 = vrot.slane %v721, %v728
        %v731 = vunpack.c.l.s4 1983009808
        %v732 = vunpack.c.0.s8 %v731
        %v733 = vlaneseq
        %v734 = vshrl.u32 %v733, 7
        %v735 = vsub.s32 %v732, %v734
        %v736 = vrot.slane %v722, %v735
        %v737 = vcombine.low %v681, %v697
        %v738 = vcombine.high %v681, %v697
        %v740 = vunpack.c.l.s4 1934713408
        %v741 = vunpack.c.0.s8 %v740
        %v742 = vlaneseq
        %v743 = vshrl.u32 %v742, 7
        %v744 = vsub.s32 %v741, %v743
        %v745 = vrot.slane %v737, %v744
        %v747 = vunpack.c.l.s4 1934713408
        %v748 = vunpack.c.0.s8 %v747
        %v749 = vlaneseq
        %v750 = vshrl.u32 %v749, 7
        %v751 = vsub.s32 %v748, %v750
        %v752 = vrot.slane %v738, %v751
        %v753 = vcombine.low %v688, %v704
        %v754 = vcombine.high %v688, %v704
        %v756 = vunpack.c.l.s4 1934713408
        %v757 = vunpack.c.0.s8 %v756
        %v758 = vlaneseq
        %v759 = vshrl.u32 %v758, 7
        %v760 = vsub.s32 %v757, %v759
        %v761 = vrot.slane %v753, %v760
        %v763 = vunpack.c.l.s4 1934713408
        %v764 = vunpack.c.0.s8 %v763
        %v765 = vlaneseq
        %v766 = vshrl.u32 %v765, 7
        %v767 = vsub.s32 %v764, %v766
        %v768 = vrot.slane %v754, %v767
        %v769 = vcombine.low %v713, %v729
        %v770 = vcombine.high %v713, %v729
        %v772 = vunpack.c.l.s4 1934713408
        %v773 = vunpack.c.0.s8 %v772
        %v774 = vlaneseq
        %v775 = vshrl.u32 %v774, 7
        %v776 = vsub.s32 %v773, %v775
        %v777 = vrot.slane %v769, %v776
        %v779 = vunpack.c.l.s4 1934713408
        %v780 = vunpack.c.0.s8 %v779
        %v781 = vlaneseq
        %v782 = vshrl.u32 %v781, 7
        %v783 = vsub.s32 %v780, %v782
        %v784 = vrot.slane %v770, %v783
        %v785 = vcombine.low %v720, %v736
        %v786 = vcombine.high %v720, %v736
        %v788 = vunpack.c.l.s4 1934713408
        %v789 = vunpack.c.0.s8 %v788
        %v790 = vlaneseq
        %v791 = vshrl.u32 %v790, 7
        %v792 = vsub.s32 %v789, %v791
        %v793 = vrot.slane %v785, %v792
        %v795 = vunpack.c.l.s4 1934713408
        %v796 = vunpack.c.0.s8 %v795
        %v797 = vlaneseq
        %v798 = vshrl.u32 %v797, 7
        %v799 = vsub.s32 %v796, %v798
        %v800 = vrot.slane %v786, %v799
        %v801 = vcombine.low %v745, %v777
        %v802 = vcombine.high %v745, %v777
        %v803 = vcombine.low %v752, %v784
        %v804 = vcombine.high %v752, %v784
        %v805 = vcombine.low %v761, %v793
        %v806 = vcombine.high %v761, %v793
        %v807 = vcombine.low %v768, %v800
        %v808 = vcombine.high %v768, %v800
        %v809 = vcombine.low %v645, %v652
        %v811 = vunpack.c.l.s4 1983009808
        %v812 = vunpack.c.0.s8 %v811
        %v813 = vlaneseq
        %v814 = vshrl.u32 %v813, 7
        %v815 = vsub.s32 %v812, %v814
        %v816 = vrot.slane %v809, %v815
        %v817 = vcombine.low %v669, %v670
        %v819 = vunpack.c.l.s4 1983009808
        %v820 = vunpack.c.0.s8 %v819
        %v821 = vlaneseq
        %v822 = vshrl.u32 %v821, 7
        %v823 = vsub.s32 %v820, %v822
        %v824 = vrot.slane %v817, %v823
        %v825 = vcombine.low %v661, %v668
        %v827 = vunpack.c.l.s4 1983009808
        %v828 = vunpack.c.0.s8 %v827
        %v829 = vlaneseq
        %v830 = vshrl.u32 %v829, 7
        %v831 = vsub.s32 %v828, %v830
        %v832 = vrot.slane %v825, %v831
        %v833 = vcombine.low %v671, %v672
        %v835 = vunpack.c.l.s4 1983009808
        %v836 = vunpack.c.0.s8 %v835
        %v837 = vlaneseq
        %v838 = vshrl.u32 %v837, 7
        %v839 = vsub.s32 %v836, %v838
        %v840 = vrot.slane %v833, %v839
        %v841 = vcombine.low %v816, %v824
        %v842 = vcombine.high %v816, %v824
        %v844 = vunpack.c.l.s4 1934713408
        %v845 = vunpack.c.0.s8 %v844
        %v846 = vlaneseq
        %v847 = vshrl.u32 %v846, 7
        %v848 = vsub.s32 %v845, %v847
        %v849 = vrot.slane %v841, %v848
        %v851 = vunpack.c.l.s4 1934713408
        %v852 = vunpack.c.0.s8 %v851
        %v853 = vlaneseq
        %v854 = vshrl.u32 %v853, 7
        %v855 = vsub.s32 %v852, %v854
        %v856 = vrot.slane %v842, %v855
        %v857 = vcombine.low %v832, %v840
        %v858 = vcombine.high %v832, %v840
        %v860 = vunpack.c.l.s4 1934713408
        %v861 = vunpack.c.0.s8 %v860
        %v862 = vlaneseq
        %v863 = vshrl.u32 %v862, 7
        %v864 = vsub.s32 %v861, %v863
        %v865 = vrot.slane %v857, %v864
        %v867 = vunpack.c.l.s4 1934713408
        %v868 = vunpack.c.0.s8 %v867
        %v869 = vlaneseq
        %v870 = vshrl.u32 %v869, 7
        %v871 = vsub.s32 %v868, %v870
        %v872 = vrot.slane %v858, %v871
        %v873 = vcombine.low %v849, %v865
        %v874 = vcombine.high %v849, %v865
        %v875 = vcombine.low %v856, %v872
        %v876 = vcombine.high %v856, %v872
        %vm877 = vcmask 64512
        %v879 = vsel %vm877, %v801, 0
        %v882 = vsel %vm877, %v805, 0
        %884 = vmatprep.subr.mxu0 0.0
        %885 = vmatpush1.xpose.msra.mxu0 %v882
        %886 = vmatprep.subr.mxu0 0.0
        %887 = vmatpush1.xpose.msra.mxu0 0.0
        %888 = vmatprep.subr.mxu0 0.0
        %889 = vmatpush1.xpose.msra.mxu0 0.0
        %890 = vmatprep.subr.mxu0 0.0
        %891 = vmatpush1.xpose.msra.mxu0 0.0
        %892 = vmatprep.subr.mxu0 0.0
        %893 = vmatpush1.xpose.msra.mxu0 0.0
        %894 = vmatprep.subr.mxu0 0.0
        %895 = vmatpush1.xpose.msra.mxu0 0.0
        %896 = vmatprep.subr.mxu0 0.0
        %897 = vmatpush1.xpose.msra.mxu0 0.0
        %898 = vmatprep.subr.mxu0 0.0
        %899 = vmatpush1.xpose.msra.mxu0 0.0
        %900 = vmatprep.subr.mxu0 0.0
        %901 = vmatpush1.xpose.msra.mxu0 0.0
        %902 = vmatprep.subr.mxu0 0.0
        %903 = vmatpush1.xpose.msra.mxu0 0.0
        %904 = vmatprep.subr.mxu0 0.0
        %905 = vmatpush1.xpose.msra.mxu0 0.0
        %906 = vmatprep.subr.mxu0 0.0
        %907 = vmatpush1.xpose.msra.mxu0 0.0
        %908 = vmatprep.subr.mxu0 0.0
        %909 = vmatpush1.xpose.msra.mxu0 0.0
        %910 = vmatprep.subr.mxu0 0.0
        %911 = vmatpush1.xpose.msra.mxu0 0.0
        %912 = vmatprep.subr.mxu0 0.0
        %913 = vmatpush1.xpose.msra.mxu0 0.0
        %914 = vmatprep.subr.mxu0 0.0
        %915 = vmatpush1.xpose.msra.mxu0 0.0
        %916 = vmatprep.subr.mxu0 0.0
        %917 = vmatpush1.xpose.msra.mxu0 0.0
        %918 = vmatprep.subr.mxu0 0.0
        %919 = vmatpush1.xpose.msra.mxu0 0.0
        %920 = vmatprep.subr.mxu0 0.0
        %921 = vmatpush1.xpose.msra.mxu0 0.0
        %922 = vmatprep.subr.mxu0 0.0
        %923 = vmatpush1.xpose.msra.mxu0 0.0
        %924 = vmatprep.subr.mxu0 0.0
        %925 = vmatpush1.xpose.msra.mxu0 0.0
        %926 = vmatprep.subr.mxu0 0.0
        %927 = vmatpush1.xpose.msra.mxu0 0.0
        %928 = vmatprep.subr.mxu0 0.0
        %929 = vmatpush1.xpose.msra.mxu0 0.0
        %930 = vmatprep.subr.mxu0 0.0
        %931 = vmatpush1.xpose.msra.mxu0 0.0
        %932 = vmatprep.subr.mxu0 0.0
        %933 = vmatpush1.xpose.msra.mxu0 0.0
        %934 = vmatprep.subr.mxu0 0.0
        %935 = vmatpush1.xpose.msra.mxu0 0.0
        %936 = vmatprep.subr.mxu0 0.0
        %937 = vmatpush1.xpose.msra.mxu0 0.0
        %938 = vmatprep.subr.mxu0 0.0
        %939 = vmatpush1.xpose.msra.mxu0 0.0
        %940 = vmatprep.subr.mxu0 0.0
        %941 = vmatpush1.xpose.msra.mxu0 0.0
        %942 = vmatprep.subr.mxu0 0.0
        %943 = vmatpush1.xpose.msra.mxu0 0.0
        %944 = vmatprep.subr.mxu0 0.0
        %945 = vmatpush1.xpose.msra.mxu0 0.0
        %946 = vmatprep.subr.mxu0 0.0
        %947 = vmatpush1.xpose.msra.mxu0 0.0
        %948 = vmatprep.mubr.f32.mxu0 0.0
        %949 = vmatmul.mubr.f32.gmra.mrb[0].mxu0 %v879
        %v950 = vpop.f32.mrb[0].mxu0
        %v951 = vadd.f32 0.0, %v950
        %v952 = vpop.f32.mrb[0].mxu0
        %953 = vdwg.mxu0
        %v955 = vsel %vm877, %v802, 0
        %v958 = vsel %vm877, %v806, 0
        %960 = vmatprep.subr.mxu0 0.0
        %961 = vmatpush1.xpose.msra.mxu0 %v958
        %962 = vmatprep.subr.mxu0 0.0
        %963 = vmatpush1.xpose.msra.mxu0 0.0
        %964 = vmatprep.subr.mxu0 0.0
        %965 = vmatpush1.xpose.msra.mxu0 0.0
        %966 = vmatprep.subr.mxu0 0.0
        %967 = vmatpush1.xpose.msra.mxu0 0.0
        %968 = vmatprep.subr.mxu0 0.0
        %969 = vmatpush1.xpose.msra.mxu0 0.0
        %970 = vmatprep.subr.mxu0 0.0
        %971 = vmatpush1.xpose.msra.mxu0 0.0
        %972 = vmatprep.subr.mxu0 0.0
        %973 = vmatpush1.xpose.msra.mxu0 0.0
        %974 = vmatprep.subr.mxu0 0.0
        %975 = vmatpush1.xpose.msra.mxu0 0.0
        %976 = vmatprep.subr.mxu0 0.0
        %977 = vmatpush1.xpose.msra.mxu0 0.0
        %978 = vmatprep.subr.mxu0 0.0
        %979 = vmatpush1.xpose.msra.mxu0 0.0
        %980 = vmatprep.subr.mxu0 0.0
        %981 = vmatpush1.xpose.msra.mxu0 0.0
        %982 = vmatprep.subr.mxu0 0.0
        %983 = vmatpush1.xpose.msra.mxu0 0.0
        %984 = vmatprep.subr.mxu0 0.0
        %985 = vmatpush1.xpose.msra.mxu0 0.0
        %986 = vmatprep.subr.mxu0 0.0
        %987 = vmatpush1.xpose.msra.mxu0 0.0
        %988 = vmatprep.subr.mxu0 0.0
        %989 = vmatpush1.xpose.msra.mxu0 0.0
        %990 = vmatprep.subr.mxu0 0.0
        %991 = vmatpush1.xpose.msra.mxu0 0.0
        %992 = vmatprep.subr.mxu0 0.0
        %993 = vmatpush1.xpose.msra.mxu0 0.0
        %994 = vmatprep.subr.mxu0 0.0
        %995 = vmatpush1.xpose.msra.mxu0 0.0
        %996 = vmatprep.subr.mxu0 0.0
        %997 = vmatpush1.xpose.msra.mxu0 0.0
        %998 = vmatprep.subr.mxu0 0.0
        %999 = vmatpush1.xpose.msra.mxu0 0.0
        %1000 = vmatprep.subr.mxu0 0.0
        %1001 = vmatpush1.xpose.msra.mxu0 0.0
        %1002 = vmatprep.subr.mxu0 0.0
        %1003 = vmatpush1.xpose.msra.mxu0 0.0
        %1004 = vmatprep.subr.mxu0 0.0
        %1005 = vmatpush1.xpose.msra.mxu0 0.0
        %1006 = vmatprep.subr.mxu0 0.0
        %1007 = vmatpush1.xpose.msra.mxu0 0.0
        %1008 = vmatprep.subr.mxu0 0.0
        %1009 = vmatpush1.xpose.msra.mxu0 0.0
        %1010 = vmatprep.subr.mxu0 0.0
        %1011 = vmatpush1.xpose.msra.mxu0 0.0
        %1012 = vmatprep.subr.mxu0 0.0
        %1013 = vmatpush1.xpose.msra.mxu0 0.0
        %1014 = vmatprep.subr.mxu0 0.0
        %1015 = vmatpush1.xpose.msra.mxu0 0.0
        %1016 = vmatprep.subr.mxu0 0.0
        %1017 = vmatpush1.xpose.msra.mxu0 0.0
        %1018 = vmatprep.subr.mxu0 0.0
        %1019 = vmatpush1.xpose.msra.mxu0 0.0
        %1020 = vmatprep.subr.mxu0 0.0
        %1021 = vmatpush1.xpose.msra.mxu0 0.0
        %1022 = vmatprep.subr.mxu0 0.0
        %1023 = vmatpush1.xpose.msra.mxu0 0.0
        %1024 = vmatprep.mubr.f32.mxu0 0.0
        %1025 = vmatmul.mubr.f32.gmra.mrb[0].mxu0 %v955
        %v1026 = vpop.f32.mrb[0].mxu0
        %v1027 = vadd.f32 0.0, %v1026
        %v1028 = vpop.f32.mrb[0].mxu0
        %1029 = vdwg.mxu0
        %v1031 = vsel %vm877, %v803, 0
        %v1034 = vsel %vm877, %v807, 0
        %1036 = vmatprep.subr.mxu0 0.0
        %1037 = vmatpush1.xpose.msra.mxu0 %v1034
        %1038 = vmatprep.subr.mxu0 0.0
        %1039 = vmatpush1.xpose.msra.mxu0 0.0
        %1040 = vmatprep.subr.mxu0 0.0
        %1041 = vmatpush1.xpose.msra.mxu0 0.0
        %1042 = vmatprep.subr.mxu0 0.0
        %1043 = vmatpush1.xpose.msra.mxu0 0.0
        %1044 = vmatprep.subr.mxu0 0.0
        %1045 = vmatpush1.xpose.msra.mxu0 0.0
        %1046 = vmatprep.subr.mxu0 0.0
        %1047 = vmatpush1.xpose.msra.mxu0 0.0
        %1048 = vmatprep.subr.mxu0 0.0
        %1049 = vmatpush1.xpose.msra.mxu0 0.0
        %1050 = vmatprep.subr.mxu0 0.0
        %1051 = vmatpush1.xpose.msra.mxu0 0.0
        %1052 = vmatprep.subr.mxu0 0.0
        %1053 = vmatpush1.xpose.msra.mxu0 0.0
        %1054 = vmatprep.subr.mxu0 0.0
        %1055 = vmatpush1.xpose.msra.mxu0 0.0
        %1056 = vmatprep.subr.mxu0 0.0
        %1057 = vmatpush1.xpose.msra.mxu0 0.0
        %1058 = vmatprep.subr.mxu0 0.0
        %1059 = vmatpush1.xpose.msra.mxu0 0.0
        %1060 = vmatprep.subr.mxu0 0.0
        %1061 = vmatpush1.xpose.msra.mxu0 0.0
        %1062 = vmatprep.subr.mxu0 0.0
        %1063 = vmatpush1.xpose.msra.mxu0 0.0
        %1064 = vmatprep.subr.mxu0 0.0
        %1065 = vmatpush1.xpose.msra.mxu0 0.0
        %1066 = vmatprep.subr.mxu0 0.0
        %1067 = vmatpush1.xpose.msra.mxu0 0.0
        %1068 = vmatprep.subr.mxu0 0.0
        %1069 = vmatpush1.xpose.msra.mxu0 0.0
        %1070 = vmatprep.subr.mxu0 0.0
        %1071 = vmatpush1.xpose.msra.mxu0 0.0
        %1072 = vmatprep.subr.mxu0 0.0
        %1073 = vmatpush1.xpose.msra.mxu0 0.0
        %1074 = vmatprep.subr.mxu0 0.0
        %1075 = vmatpush1.xpose.msra.mxu0 0.0
        %1076 = vmatprep.subr.mxu0 0.0
        %1077 = vmatpush1.xpose.msra.mxu0 0.0
        %1078 = vmatprep.subr.mxu0 0.0
        %1079 = vmatpush1.xpose.msra.mxu0 0.0
        %1080 = vmatprep.subr.mxu0 0.0
        %1081 = vmatpush1.xpose.msra.mxu0 0.0
        %1082 = vmatprep.subr.mxu0 0.0
        %1083 = vmatpush1.xpose.msra.mxu0 0.0
        %1084 = vmatprep.subr.mxu0 0.0
        %1085 = vmatpush1.xpose.msra.mxu0 0.0
        %1086 = vmatprep.subr.mxu0 0.0
        %1087 = vmatpush1.xpose.msra.mxu0 0.0
        %1088 = vmatprep.subr.mxu0 0.0
        %1089 = vmatpush1.xpose.msra.mxu0 0.0
        %1090 = vmatprep.subr.mxu0 0.0
        %1091 = vmatpush1.xpose.msra.mxu0 0.0
        %1092 = vmatprep.subr.mxu0 0.0
        %1093 = vmatpush1.xpose.msra.mxu0 0.0
        %1094 = vmatprep.subr.mxu0 0.0
        %1095 = vmatpush1.xpose.msra.mxu0 0.0
        %1096 = vmatprep.subr.mxu0 0.0
        %1097 = vmatpush1.xpose.msra.mxu0 0.0
        %1098 = vmatprep.subr.mxu0 0.0
        %1099 = vmatpush1.xpose.msra.mxu0 0.0
        %1100 = vmatprep.mubr.f32.mxu0 0.0
        %1101 = vmatmul.mubr.f32.gmra.mrb[0].mxu0 %v1031
        %v1102 = vpop.f32.mrb[0].mxu0
        %v1103 = vadd.f32 0.0, %v1102
        %v1104 = vpop.f32.mrb[0].mxu0
        %1105 = vdwg.mxu0
        %v1107 = vsel %vm877, %v804, 0
        %v1110 = vsel %vm877, %v808, 0
        %1112 = vmatprep.subr.mxu0 0.0
        %1113 = vmatpush1.xpose.msra.mxu0 %v1110
        %1114 = vmatprep.subr.mxu0 0.0
        %1115 = vmatpush1.xpose.msra.mxu0 0.0
        %1116 = vmatprep.subr.mxu0 0.0
        %1117 = vmatpush1.xpose.msra.mxu0 0.0
        %1118 = vmatprep.subr.mxu0 0.0
        %1119 = vmatpush1.xpose.msra.mxu0 0.0
        %1120 = vmatprep.subr.mxu0 0.0
        %1121 = vmatpush1.xpose.msra.mxu0 0.0
        %1122 = vmatprep.subr.mxu0 0.0
        %1123 = vmatpush1.xpose.msra.mxu0 0.0
        %1124 = vmatprep.subr.mxu0 0.0
        %1125 = vmatpush1.xpose.msra.mxu0 0.0
        %1126 = vmatprep.subr.mxu0 0.0
        %1127 = vmatpush1.xpose.msra.mxu0 0.0
        %1128 = vmatprep.subr.mxu0 0.0
        %1129 = vmatpush1.xpose.msra.mxu0 0.0
        %1130 = vmatprep.subr.mxu0 0.0
        %1131 = vmatpush1.xpose.msra.mxu0 0.0
        %1132 = vmatprep.subr.mxu0 0.0
        %1133 = vmatpush1.xpose.msra.mxu0 0.0
        %1134 = vmatprep.subr.mxu0 0.0
        %1135 = vmatpush1.xpose.msra.mxu0 0.0
        %1136 = vmatprep.subr.mxu0 0.0
        %1137 = vmatpush1.xpose.msra.mxu0 0.0
        %1138 = vmatprep.subr.mxu0 0.0
        %1139 = vmatpush1.xpose.msra.mxu0 0.0
        %1140 = vmatprep.subr.mxu0 0.0
        %1141 = vmatpush1.xpose.msra.mxu0 0.0
        %1142 = vmatprep.subr.mxu0 0.0
        %1143 = vmatpush1.xpose.msra.mxu0 0.0
        %1144 = vmatprep.subr.mxu0 0.0
        %1145 = vmatpush1.xpose.msra.mxu0 0.0
        %1146 = vmatprep.subr.mxu0 0.0
        %1147 = vmatpush1.xpose.msra.mxu0 0.0
        %1148 = vmatprep.subr.mxu0 0.0
        %1149 = vmatpush1.xpose.msra.mxu0 0.0
        %1150 = vmatprep.subr.mxu0 0.0
        %1151 = vmatpush1.xpose.msra.mxu0 0.0
        %1152 = vmatprep.subr.mxu0 0.0
        %1153 = vmatpush1.xpose.msra.mxu0 0.0
        %1154 = vmatprep.subr.mxu0 0.0
        %1155 = vmatpush1.xpose.msra.mxu0 0.0
        %1156 = vmatprep.subr.mxu0 0.0
        %1157 = vmatpush1.xpose.msra.mxu0 0.0
        %1158 = vmatprep.subr.mxu0 0.0
        %1159 = vmatpush1.xpose.msra.mxu0 0.0
        %1160 = vmatprep.subr.mxu0 0.0
        %1161 = vmatpush1.xpose.msra.mxu0 0.0
        %1162 = vmatprep.subr.mxu0 0.0
        %1163 = vmatpush1.xpose.msra.mxu0 0.0
        %1164 = vmatprep.subr.mxu0 0.0
        %1165 = vmatpush1.xpose.msra.mxu0 0.0
        %1166 = vmatprep.subr.mxu0 0.0
        %1167 = vmatpush1.xpose.msra.mxu0 0.0
        %1168 = vmatprep.subr.mxu0 0.0
        %1169 = vmatpush1.xpose.msra.mxu0 0.0
        %1170 = vmatprep.subr.mxu0 0.0
        %1171 = vmatpush1.xpose.msra.mxu0 0.0
        %1172 = vmatprep.subr.mxu0 0.0
        %1173 = vmatpush1.xpose.msra.mxu0 0.0
        %1174 = vmatprep.subr.mxu0 0.0
        %1175 = vmatpush1.xpose.msra.mxu0 0.0
        %1176 = vmatprep.mubr.f32.mxu0 0.0
        %1177 = vmatmul.mubr.f32.gmra.mrb[0].mxu0 %v1107
        %v1178 = vpop.f32.mrb[0].mxu0
        %v1179 = vadd.f32 0.0, %v1178
        %v1180 = vpop.f32.mrb[0].mxu0
        %1181 = vdwg.mxu0
        %v1183 = vlaneseq
        %v1184 = vshrl.u32 %v1183, 7
        %v1185 = vsub.s32 0, %v1184
        %v1186 = vrot.slane %v349, %v1185
        %v1188 = vmul.f32 %v805, %v1186
        %v1189 = vmul.f32 %v806, %v1186
        %v1190 = vmul.f32 %v807, %v1186
        %v1191 = vmul.f32 %v808, %v1186
        %v1192 = vsel %vm877, %v1188, 0.0
        %1193 = vadd.xlane.f32.xlu0 %v1192
        %v1194 = vpop.xlane.xlu0 %1193
        %v1195 = vsel %vm877, %v1189, 0.0
        %1196 = vadd.xlane.f32.xlu0 %v1195
        %v1197 = vpop.xlane.xlu0 %1196
        %v1198 = vsel %vm877, %v1190, 0.0
        %1199 = vadd.xlane.f32.xlu0 %v1198
        %v1200 = vpop.xlane.xlu0 %1199
        %v1201 = vsel %vm877, %v1191, 0.0
        %1202 = vadd.xlane.f32.xlu0 %v1201
        %v1203 = vpop.xlane.xlu0 %1202
        %v1204 = vsel %vm877, %v951, -inf
        %1205 = vmax.xlane.f32.xlu0 %v1204
        %v1206 = vpop.xlane.xlu0 %1205
        %v1207 = vsel %vm877, %v1027, -inf
        %1208 = vmax.xlane.f32.xlu0 %v1207
        %v1209 = vpop.xlane.xlu0 %1208
        %v1210 = vsel %vm877, %v1103, -inf
        %1211 = vmax.xlane.f32.xlu0 %v1210
        %v1212 = vpop.xlane.xlu0 %1211
        %v1213 = vsel %vm877, %v1179, -inf
        %1214 = vmax.xlane.f32.xlu0 %v1213
        %v1215 = vpop.xlane.xlu0 %1214
        %v1216 = vsub.f32 %v951, %v1206
        %v1217 = vsub.f32 %v1027, %v1209
        %v1218 = vsub.f32 %v1103, %v1212
        %v1219 = vsub.f32 %v1179, %v1215
        %v1220 = vmul.f32 %v1216, 1.442695
        %v1221 = vpow.pop %v1220
        %v1222 = vmul.f32 %v1217, 1.442695
        %v1223 = vpow.pop %v1222
        %v1224 = vmul.f32 %v1218, 1.442695
        %v1225 = vpow.pop %v1224
        %v1226 = vmul.f32 %v1219, 1.442695
        %v1227 = vpow.pop %v1226
        %v1228 = vsel %vm877, %v1221, 0.0
        %1229 = vadd.xlane.f32.xlu0 %v1228
        %v1230 = vpop.xlane.xlu0 %1229
        %v1231 = vsel %vm877, %v1223, 0.0
        %1232 = vadd.xlane.f32.xlu0 %v1231
        %v1233 = vpop.xlane.xlu0 %1232
        %v1234 = vsel %vm877, %v1225, 0.0
        %1235 = vadd.xlane.f32.xlu0 %v1234
        %v1236 = vpop.xlane.xlu0 %1235
        %v1237 = vsel %vm877, %v1227, 0.0
        %1238 = vadd.xlane.f32.xlu0 %v1237
        %v1239 = vpop.xlane.xlu0 %1238
        %v1240 = vrcp.pop %v1230
        %v1241 = vmul.f32 1.0, %v1240
        %v1242 = vrcp.pop %v1233
        %v1243 = vmul.f32 1.0, %v1242
        %v1244 = vrcp.pop %v1236
        %v1245 = vmul.f32 1.0, %v1244
        %v1246 = vrcp.pop %v1239
        %v1247 = vmul.f32 1.0, %v1246
        %v1248 = vmul.f32 %v1221, %v1241
        %v1249 = vmul.f32 %v1223, %v1243
        %v1250 = vmul.f32 %v1225, %v1245
        %v1251 = vmul.f32 %v1227, %v1247
        %v1256 = vlaneseq
        %v1257 = vand.u32 %v1256, 127
        %v1258 = vlaneseq
        %v1259 = vshrl.u32 %v1258, 7
        %v1260 = vsub.s32 %v1257, %v1259
        %v1261 = vrot.slane %v1194, %v1260
        %v1262 = vlaneseq
        %v1263 = vshrl.u32 %v1262, 7
        %v1264 = vsub.s32 %v1257, %v1263
        %v1265 = vrot.slane %v1197, %v1264
        %v1266 = vlaneseq
        %v1267 = vshrl.u32 %v1266, 7
        %v1268 = vsub.s32 %v1257, %v1267
        %v1269 = vrot.slane %v1200, %v1268
        %v1270 = vlaneseq
        %v1271 = vshrl.u32 %v1270, 7
        %v1272 = vsub.s32 %v1257, %v1271
        %v1273 = vrot.slane %v1203, %v1272
        %vm1274 = vcmask 1041409
        %v1275 = vsel %vm1274, %v1265, %v1261
        %vm1276 = vcmask 1042434
        %v1277 = vsel %vm1276, %v1269, %v1275
        %vm1278 = vcmask 1043459
        %v1279 = vsel %vm1278, %v1273, %v1277
        %vm1281 = vcmask 60416
        %v1282 = vsel %vm1281, %v1279, -inf
        %1283 = vmax.xlane.f32.xlu0 %v1282
        %v1284 = vpop.xlane.xlu0 %1283
        %v1286 = vlaneseq
        %v1287 = vshrl.u32 %v1286, 7
        %v1288 = vsub.s32 0, %v1287
        %v1289 = vrot.slane %v1284, %v1288
        %v1290 = vlaneseq
        %v1291 = vshrl.u32 %v1290, 7
        %v1292 = vsub.s32 1, %v1291
        %v1293 = vrot.slane %v1284, %v1292
        %v1294 = vlaneseq
        %v1295 = vshrl.u32 %v1294, 7
        %v1296 = vsub.s32 2, %v1295
        %v1297 = vrot.slane %v1284, %v1296
        %v1298 = vlaneseq
        %v1299 = vshrl.u32 %v1298, 7
        %v1300 = vsub.s32 3, %v1299
        %v1301 = vrot.slane %v1284, %v1300
        %v1306 = vsub.f32 %v1194, %v1289
        %v1307 = vsub.f32 %v1197, %v1293
        %v1308 = vsub.f32 %v1200, %v1297
        %v1309 = vsub.f32 %v1203, %v1301
        %v1310 = vmul.f32 %v1306, 1.442695
        %v1311 = vpow.pop %v1310
        %v1312 = vmul.f32 %v1307, 1.442695
        %v1313 = vpow.pop %v1312
        %v1314 = vmul.f32 %v1308, 1.442695
        %v1315 = vpow.pop %v1314
        %v1316 = vmul.f32 %v1309, 1.442695
        %v1317 = vpow.pop %v1316
        %1322 = vset.pattern.permute.xlu0 0
        %1323 = vperm.xlu0 %1322, %v1311
        %v1324 = vpop.permute.xlu0 %1323
        %1325 = vset.pattern.permute.xlu0 0
        %1326 = vperm.xlu0 %1325, %v1313
        %v1327 = vpop.permute.xlu0 %1326
        %1328 = vset.pattern.permute.xlu0 0
        %1329 = vperm.xlu0 %1328, %v1315
        %v1330 = vpop.permute.xlu0 %1329
        %1331 = vset.pattern.permute.xlu0 0
        %1332 = vperm.xlu0 %1331, %v1317
        %v1333 = vpop.permute.xlu0 %1332
        %v1334 = vlaneseq
        %v1335 = vshrl.u32 %v1334, 7
        %v1336 = vsub.s32 %v1257, %v1335
        %v1337 = vrot.slane %v1324, %v1336
        %v1338 = vlaneseq
        %v1339 = vshrl.u32 %v1338, 7
        %v1340 = vsub.s32 %v1257, %v1339
        %v1341 = vrot.slane %v1327, %v1340
        %v1342 = vlaneseq
        %v1343 = vshrl.u32 %v1342, 7
        %v1344 = vsub.s32 %v1257, %v1343
        %v1345 = vrot.slane %v1330, %v1344
        %v1346 = vlaneseq
        %v1347 = vshrl.u32 %v1346, 7
        %v1348 = vsub.s32 %v1257, %v1347
        %v1349 = vrot.slane %v1333, %v1348
        %v1350 = vsel %vm1274, %v1341, %v1337
        %v1351 = vsel %vm1276, %v1345, %v1350
        %v1352 = vsel %vm1278, %v1349, %v1351
        %v1354 = vsel %vm1281, %v1352, 0.0
        %1355 = vadd.xlane.f32.xlu0 %v1354
        %v1356 = vpop.xlane.xlu0 %1355
        %v1357 = vrcp.pop %v1356
        %v1358 = vmul.f32 1.0, %v1357
        %v1360 = vlaneseq
        %v1361 = vshrl.u32 %v1360, 7
        %v1362 = vsub.s32 0, %v1361
        %v1363 = vrot.slane %v1358, %v1362
        %v1364 = vlaneseq
        %v1365 = vshrl.u32 %v1364, 7
        %v1366 = vsub.s32 1, %v1365
        %v1367 = vrot.slane %v1358, %v1366
        %v1368 = vlaneseq
        %v1369 = vshrl.u32 %v1368, 7
        %v1370 = vsub.s32 2, %v1369
        %v1371 = vrot.slane %v1358, %v1370
        %v1372 = vlaneseq
        %v1373 = vshrl.u32 %v1372, 7
        %v1374 = vsub.s32 3, %v1373
        %v1375 = vrot.slane %v1358, %v1374
        %v1380 = vmul.f32 %v1311, %v1363
        %v1381 = vmul.f32 %v1313, %v1367
        %v1382 = vmul.f32 %v1315, %v1371
        %v1383 = vmul.f32 %v1317, %v1375
        %1388 = vset.pattern.permute.xlu0 0
        %1389 = vperm.xlu0 %1388, %v1380
        %v1390 = vpop.permute.xlu0 %1389
        %1391 = vset.pattern.permute.xlu0 0
        %1392 = vperm.xlu0 %1391, %v1381
        %v1393 = vpop.permute.xlu0 %1392
        %1394 = vset.pattern.permute.xlu0 0
        %1395 = vperm.xlu0 %1394, %v1382
        %v1396 = vpop.permute.xlu0 %1395
        %1397 = vset.pattern.permute.xlu0 0
        %1398 = vperm.xlu0 %1397, %v1383
        %v1399 = vpop.permute.xlu0 %1398
        %v1400 = vlaneseq
        %v1401 = vshrl.u32 %v1400, 7
        %v1402 = vsub.s32 %v1257, %v1401
        %v1403 = vrot.slane %v1390, %v1402
        %v1404 = vlaneseq
        %v1405 = vshrl.u32 %v1404, 7
        %v1406 = vsub.s32 %v1257, %v1405
        %v1407 = vrot.slane %v1393, %v1406
        %v1408 = vlaneseq
        %v1409 = vshrl.u32 %v1408, 7
        %v1410 = vsub.s32 %v1257, %v1409
        %v1411 = vrot.slane %v1396, %v1410
        %v1412 = vlaneseq
        %v1413 = vshrl.u32 %v1412, 7
        %v1414 = vsub.s32 %v1257, %v1413
        %v1415 = vrot.slane %v1399, %v1414
        %v1416 = vsel %vm1276, %v1403, %v1403
        %v1417 = vsel %vm1278, %v1403, %v1416
        %vm1418 = vcmask 1044484
        %v1419 = vsel %vm1418, %v1403, %v1417
        %vm1420 = vcmask 1045509
        %v1421 = vsel %vm1420, %v1403, %v1419
        %vm1422 = vcmask 1046534
        %v1423 = vsel %vm1422, %v1403, %v1421
        %vm1424 = vcmask 1047559
        %v1425 = vsel %vm1424, %v1403, %v1423
        %v1426 = vsel %vm1276, %v1407, %v1407
        %v1427 = vsel %vm1278, %v1407, %v1426
        %v1428 = vsel %vm1418, %v1407, %v1427
        %v1429 = vsel %vm1420, %v1407, %v1428
        %v1430 = vsel %vm1422, %v1407, %v1429
        %v1431 = vsel %vm1424, %v1407, %v1430
        %v1432 = vsel %vm1276, %v1411, %v1411
        %v1433 = vsel %vm1278, %v1411, %v1432
        %v1434 = vsel %vm1418, %v1411, %v1433
        %v1435 = vsel %vm1420, %v1411, %v1434
        %v1436 = vsel %vm1422, %v1411, %v1435
        %v1437 = vsel %vm1424, %v1411, %v1436
        %v1438 = vsel %vm1276, %v1415, %v1415
        %v1439 = vsel %vm1278, %v1415, %v1438
        %v1440 = vsel %vm1418, %v1415, %v1439
        %v1441 = vsel %vm1420, %v1415, %v1440
        %v1442 = vsel %vm1422, %v1415, %v1441
        %v1443 = vsel %vm1424, %v1415, %v1442
        %v1448 = vmul.f32 %v1248, %v1425
        %v1449 = vmul.f32 %v1249, %v1431
        %v1450 = vmul.f32 %v1250, %v1437
        %v1451 = vmul.f32 %v1251, %v1443
        %v1452 = vcombine.low %v1448, %v1450
        %v1453 = vcombine.high %v1448, %v1450
        %v1455 = vunpack.c.l.s4 1983009808
        %v1456 = vunpack.c.0.s8 %v1455
        %v1457 = vlaneseq
        %v1458 = vshrl.u32 %v1457, 7
        %v1459 = vsub.s32 %v1456, %v1458
        %v1460 = vrot.slane %v1452, %v1459
        %v1462 = vunpack.c.l.s4 1983009808
        %v1463 = vunpack.c.0.s8 %v1462
        %v1464 = vlaneseq
        %v1465 = vshrl.u32 %v1464, 7
        %v1466 = vsub.s32 %v1463, %v1465
        %v1467 = vrot.slane %v1453, %v1466
        %v1468 = vcombine.low %v1449, %v1451
        %v1469 = vcombine.high %v1449, %v1451
        %v1471 = vunpack.c.l.s4 1983009808
        %v1472 = vunpack.c.0.s8 %v1471
        %v1473 = vlaneseq
        %v1474 = vshrl.u32 %v1473, 7
        %v1475 = vsub.s32 %v1472, %v1474
        %v1476 = vrot.slane %v1468, %v1475
        %v1478 = vunpack.c.l.s4 1983009808
        %v1479 = vunpack.c.0.s8 %v1478
        %v1480 = vlaneseq
        %v1481 = vshrl.u32 %v1480, 7
        %v1482 = vsub.s32 %v1479, %v1481
        %v1483 = vrot.slane %v1469, %v1482
        %v1484 = vcombine.low %v1460, %v1476
        %v1485 = vcombine.high %v1460, %v1476
        %v1487 = vunpack.c.l.s4 1934713408
        %v1488 = vunpack.c.0.s8 %v1487
        %v1489 = vlaneseq
        %v1490 = vshrl.u32 %v1489, 7
        %v1491 = vsub.s32 %v1488, %v1490
        %v1492 = vrot.slane %v1484, %v1491
        %v1494 = vunpack.c.l.s4 1934713408
        %v1495 = vunpack.c.0.s8 %v1494
        %v1496 = vlaneseq
        %v1497 = vshrl.u32 %v1496, 7
        %v1498 = vsub.s32 %v1495, %v1497
        %v1499 = vrot.slane %v1485, %v1498
        %v1500 = vcombine.low %v1467, %v1483
        %v1501 = vcombine.high %v1467, %v1483
        %v1503 = vunpack.c.l.s4 1934713408
        %v1504 = vunpack.c.0.s8 %v1503
        %v1505 = vlaneseq
        %v1506 = vshrl.u32 %v1505, 7
        %v1507 = vsub.s32 %v1504, %v1506
        %v1508 = vrot.slane %v1500, %v1507
        %v1510 = vunpack.c.l.s4 1934713408
        %v1511 = vunpack.c.0.s8 %v1510
        %v1512 = vlaneseq
        %v1513 = vshrl.u32 %v1512, 7
        %v1514 = vsub.s32 %v1511, %v1513
        %v1515 = vrot.slane %v1501, %v1514
        %v1516 = vcombine.high %v1492, 0.0
        %v1517 = vcombine.high %v1499, 0.0
        %v1518 = vcombine.high %v1508, 0.0
        %v1519 = vcombine.high %v1515, 0.0
        %1521 = vrot.lane.b32.xlu0 %v1516, 8
        %v1522 = vpop.permute.xlu0 %1521
        %1525 = vrot.lane.b32.xlu0 %v1499, 16
        %v1526 = vpop.permute.xlu0 %1525
        %1529 = vrot.lane.b32.xlu0 %v1517, 24
        %v1530 = vpop.permute.xlu0 %1529
        %1533 = vrot.lane.b32.xlu0 %v1508, 32
        %v1534 = vpop.permute.xlu0 %1533
        %1537 = vrot.lane.b32.xlu0 %v1518, 40
        %v1538 = vpop.permute.xlu0 %1537
        %1541 = vrot.lane.b32.xlu0 %v1515, 48
        %v1542 = vpop.permute.xlu0 %1541
        %1545 = vrot.lane.b32.xlu0 %v1519, 56
        %v1546 = vpop.permute.xlu0 %1545
        %v1548 = vsel %vm877, %v1492, %v1522
        %vm1549 = vcmask 130048
        %v1550 = vsel %vm1549, %v1548, %v1526
        %vm1551 = vcmask 195584
        %v1552 = vsel %vm1551, %v1550, %v1530
        %v1553 = vsel %vm361, %v1552, %v1534
        %vm1554 = vcmask 326656
        %v1555 = vsel %vm1554, %v1553, %v1538
        %vm1556 = vcmask 392192
        %v1557 = vsel %vm1556, %v1555, %v1542
        %vm1558 = vcmask 457728
        %v1559 = vsel %vm1558, %v1557, %v1546
        %vm1560 = vcmask 519168
        %1561 = vst.msk [vmem:[%s344] sm:$0xf] %vm1560, %v1559
        %v1563 = vsel %vm877, %v1448, 0
        %1565 = vmatprep.subr.mxu0 0.0
        %1566 = vmatpush1.msra.mxu0 %v873
        %1567 = vmatprep.subr.mxu0 0.0
        %1568 = vmatpush1.msra.mxu0 0.0
        %1569 = vmatprep.subr.mxu0 0.0
        %1570 = vmatpush1.msra.mxu0 0.0
        %1571 = vmatprep.subr.mxu0 0.0
        %1572 = vmatpush1.msra.mxu0 0.0
        %1573 = vmatprep.subr.mxu0 0.0
        %1574 = vmatpush1.msra.mxu0 0.0
        %1575 = vmatprep.subr.mxu0 0.0
        %1576 = vmatpush1.msra.mxu0 0.0
        %1577 = vmatprep.subr.mxu0 0.0
        %1578 = vmatpush1.msra.mxu0 0.0
        %1579 = vmatprep.subr.mxu0 0.0
        %1580 = vmatpush1.msra.mxu0 0.0
        %1581 = vmatprep.subr.mxu0 0.0
        %1582 = vmatpush1.msra.mxu0 0.0
        %1583 = vmatprep.subr.mxu0 0.0
        %1584 = vmatpush1.msra.mxu0 0.0
        %1585 = vmatprep.subr.mxu0 0.0
        %1586 = vmatpush1.msra.mxu0 0.0
        %1587 = vmatprep.subr.mxu0 0.0
        %1588 = vmatpush1.msra.mxu0 0.0
        %1589 = vmatprep.subr.mxu0 0.0
        %1590 = vmatpush1.msra.mxu0 0.0
        %1591 = vmatprep.subr.mxu0 0.0
        %1592 = vmatpush1.msra.mxu0 0.0
        %1593 = vmatprep.subr.mxu0 0.0
        %1594 = vmatpush1.msra.mxu0 0.0
        %1595 = vmatprep.subr.mxu0 0.0
        %1596 = vmatpush1.msra.mxu0 0.0
        %1597 = vmatprep.subr.mxu0 0.0
        %1598 = vmatpush1.msra.mxu0 0.0
        %1599 = vmatprep.subr.mxu0 0.0
        %1600 = vmatpush1.msra.mxu0 0.0
        %1601 = vmatprep.subr.mxu0 0.0
        %1602 = vmatpush1.msra.mxu0 0.0
        %1603 = vmatprep.subr.mxu0 0.0
        %1604 = vmatpush1.msra.mxu0 0.0
        %1605 = vmatprep.subr.mxu0 0.0
        %1606 = vmatpush1.msra.mxu0 0.0
        %1607 = vmatprep.subr.mxu0 0.0
        %1608 = vmatpush1.msra.mxu0 0.0
        %1609 = vmatprep.subr.mxu0 0.0
        %1610 = vmatpush1.msra.mxu0 0.0
        %1611 = vmatprep.subr.mxu0 0.0
        %1612 = vmatpush1.msra.mxu0 0.0
        %1613 = vmatprep.subr.mxu0 0.0
        %1614 = vmatpush1.msra.mxu0 0.0
        %1615 = vmatprep.subr.mxu0 0.0
        %1616 = vmatpush1.msra.mxu0 0.0
        %1617 = vmatprep.subr.mxu0 0.0
        %1618 = vmatpush1.msra.mxu0 0.0
        %1619 = vmatprep.subr.mxu0 0.0
        %1620 = vmatpush1.msra.mxu0 0.0
        %1621 = vmatprep.subr.mxu0 0.0
        %1622 = vmatpush1.msra.mxu0 0.0
        %1623 = vmatprep.subr.mxu0 0.0
        %1624 = vmatpush1.msra.mxu0 0.0
        %1625 = vmatprep.subr.mxu0 0.0
        %1626 = vmatpush1.msra.mxu0 0.0
        %1627 = vmatprep.subr.mxu0 0.0
        %1628 = vmatpush1.msra.mxu0 0.0
        %1629 = vmatprep.mubr.f32.mxu0 0.0
        %1630 = vmatmul.mubr.f32.gmra.mrb[0].mxu0 %v1563
        %v1631 = vpop.f32.mrb[0].mxu0
        %v1632 = vadd.f32 0.0, %v1631
        %v1633 = vpop.f32.mrb[0].mxu0
        %1634 = vdwg.mxu0
        %v1636 = vsel %vm877, %v1449, 0
        %1638 = vmatprep.subr.mxu0 0.0
        %1639 = vmatpush1.msra.mxu0 %v874
        %1640 = vmatprep.subr.mxu0 0.0
        %1641 = vmatpush1.msra.mxu0 0.0
        %1642 = vmatprep.subr.mxu0 0.0
        %1643 = vmatpush1.msra.mxu0 0.0
        %1644 = vmatprep.subr.mxu0 0.0
        %1645 = vmatpush1.msra.mxu0 0.0
        %1646 = vmatprep.subr.mxu0 0.0
        %1647 = vmatpush1.msra.mxu0 0.0
        %1648 = vmatprep.subr.mxu0 0.0
        %1649 = vmatpush1.msra.mxu0 0.0
        %1650 = vmatprep.subr.mxu0 0.0
        %1651 = vmatpush1.msra.mxu0 0.0
        %1652 = vmatprep.subr.mxu0 0.0
        %1653 = vmatpush1.msra.mxu0 0.0
        %1654 = vmatprep.subr.mxu0 0.0
        %1655 = vmatpush1.msra.mxu0 0.0
        %1656 = vmatprep.subr.mxu0 0.0
        %1657 = vmatpush1.msra.mxu0 0.0
        %1658 = vmatprep.subr.mxu0 0.0
        %1659 = vmatpush1.msra.mxu0 0.0
        %1660 = vmatprep.subr.mxu0 0.0
        %1661 = vmatpush1.msra.mxu0 0.0
        %1662 = vmatprep.subr.mxu0 0.0
        %1663 = vmatpush1.msra.mxu0 0.0
        %1664 = vmatprep.subr.mxu0 0.0
        %1665 = vmatpush1.msra.mxu0 0.0
        %1666 = vmatprep.subr.mxu0 0.0
        %1667 = vmatpush1.msra.mxu0 0.0
        %1668 = vmatprep.subr.mxu0 0.0
        %1669 = vmatpush1.msra.mxu0 0.0
        %1670 = vmatprep.subr.mxu0 0.0
        %1671 = vmatpush1.msra.mxu0 0.0
        %1672 = vmatprep.subr.mxu0 0.0
        %1673 = vmatpush1.msra.mxu0 0.0
        %1674 = vmatprep.subr.mxu0 0.0
        %1675 = vmatpush1.msra.mxu0 0.0
        %1676 = vmatprep.subr.mxu0 0.0
        %1677 = vmatpush1.msra.mxu0 0.0
        %1678 = vmatprep.subr.mxu0 0.0
        %1679 = vmatpush1.msra.mxu0 0.0
        %1680 = vmatprep.subr.mxu0 0.0
        %1681 = vmatpush1.msra.mxu0 0.0
        %1682 = vmatprep.subr.mxu0 0.0
        %1683 = vmatpush1.msra.mxu0 0.0
        %1684 = vmatprep.subr.mxu0 0.0
        %1685 = vmatpush1.msra.mxu0 0.0
        %1686 = vmatprep.subr.mxu0 0.0
        %1687 = vmatpush1.msra.mxu0 0.0
        %1688 = vmatprep.subr.mxu0 0.0
        %1689 = vmatpush1.msra.mxu0 0.0
        %1690 = vmatprep.subr.mxu0 0.0
        %1691 = vmatpush1.msra.mxu0 0.0
        %1692 = vmatprep.subr.mxu0 0.0
        %1693 = vmatpush1.msra.mxu0 0.0
        %1694 = vmatprep.subr.mxu0 0.0
        %1695 = vmatpush1.msra.mxu0 0.0
        %1696 = vmatprep.subr.mxu0 0.0
        %1697 = vmatpush1.msra.mxu0 0.0
        %1698 = vmatprep.subr.mxu0 0.0
        %1699 = vmatpush1.msra.mxu0 0.0
        %1700 = vmatprep.subr.mxu0 0.0
        %1701 = vmatpush1.msra.mxu0 0.0
        %1702 = vmatprep.mubr.f32.mxu0 0.0
        %1703 = vmatmul.mubr.f32.gmra.mrb[0].mxu0 %v1636
        %v1704 = vpop.f32.mrb[0].mxu0
        %v1705 = vadd.f32 0.0, %v1704
        %v1706 = vpop.f32.mrb[0].mxu0
        %1707 = vdwg.mxu0
        %v1709 = vsel %vm877, %v1450, 0
        %1711 = vmatprep.subr.mxu0 0.0
        %1712 = vmatpush1.msra.mxu0 %v875
        %1713 = vmatprep.subr.mxu0 0.0
        %1714 = vmatpush1.msra.mxu0 0.0
        %1715 = vmatprep.subr.mxu0 0.0
        %1716 = vmatpush1.msra.mxu0 0.0
        %1717 = vmatprep.subr.mxu0 0.0
        %1718 = vmatpush1.msra.mxu0 0.0
        %1719 = vmatprep.subr.mxu0 0.0
        %1720 = vmatpush1.msra.mxu0 0.0
        %1721 = vmatprep.subr.mxu0 0.0
        %1722 = vmatpush1.msra.mxu0 0.0
        %1723 = vmatprep.subr.mxu0 0.0
        %1724 = vmatpush1.msra.mxu0 0.0
        %1725 = vmatprep.subr.mxu0 0.0
        %1726 = vmatpush1.msra.mxu0 0.0
        %1727 = vmatprep.subr.mxu0 0.0
        %1728 = vmatpush1.msra.mxu0 0.0
        %1729 = vmatprep.subr.mxu0 0.0
        %1730 = vmatpush1.msra.mxu0 0.0
        %1731 = vmatprep.subr.mxu0 0.0
        %1732 = vmatpush1.msra.mxu0 0.0
        %1733 = vmatprep.subr.mxu0 0.0
        %1734 = vmatpush1.msra.mxu0 0.0
        %1735 = vmatprep.subr.mxu0 0.0
        %1736 = vmatpush1.msra.mxu0 0.0
        %1737 = vmatprep.subr.mxu0 0.0
        %1738 = vmatpush1.msra.mxu0 0.0
        %1739 = vmatprep.subr.mxu0 0.0
        %1740 = vmatpush1.msra.mxu0 0.0
        %1741 = vmatprep.subr.mxu0 0.0
        %1742 = vmatpush1.msra.mxu0 0.0
        %1743 = vmatprep.subr.mxu0 0.0
        %1744 = vmatpush1.msra.mxu0 0.0
        %1745 = vmatprep.subr.mxu0 0.0
        %1746 = vmatpush1.msra.mxu0 0.0
        %1747 = vmatprep.subr.mxu0 0.0
        %1748 = vmatpush1.msra.mxu0 0.0
        %1749 = vmatprep.subr.mxu0 0.0
        %1750 = vmatpush1.msra.mxu0 0.0
        %1751 = vmatprep.subr.mxu0 0.0
        %1752 = vmatpush1.msra.mxu0 0.0
        %1753 = vmatprep.subr.mxu0 0.0
        %1754 = vmatpush1.msra.mxu0 0.0
        %1755 = vmatprep.subr.mxu0 0.0
        %1756 = vmatpush1.msra.mxu0 0.0
        %1757 = vmatprep.subr.mxu0 0.0
        %1758 = vmatpush1.msra.mxu0 0.0
        %1759 = vmatprep.subr.mxu0 0.0
        %1760 = vmatpush1.msra.mxu0 0.0
        %1761 = vmatprep.subr.mxu0 0.0
        %1762 = vmatpush1.msra.mxu0 0.0
        %1763 = vmatprep.subr.mxu0 0.0
        %1764 = vmatpush1.msra.mxu0 0.0
        %1765 = vmatprep.subr.mxu0 0.0
        %1766 = vmatpush1.msra.mxu0 0.0
        %1767 = vmatprep.subr.mxu0 0.0
        %1768 = vmatpush1.msra.mxu0 0.0
        %1769 = vmatprep.subr.mxu0 0.0
        %1770 = vmatpush1.msra.mxu0 0.0
        %1771 = vmatprep.subr.mxu0 0.0
        %1772 = vmatpush1.msra.mxu0 0.0
        %1773 = vmatprep.subr.mxu0 0.0
        %1774 = vmatpush1.msra.mxu0 0.0
        %1775 = vmatprep.mubr.f32.mxu0 0.0
        %1776 = vmatmul.mubr.f32.gmra.mrb[0].mxu0 %v1709
        %v1777 = vpop.f32.mrb[0].mxu0
        %v1778 = vadd.f32 0.0, %v1777
        %v1779 = vpop.f32.mrb[0].mxu0
        %1780 = vdwg.mxu0
        %v1782 = vsel %vm877, %v1451, 0
        %1784 = vmatprep.subr.mxu0 0.0
        %1785 = vmatpush1.msra.mxu0 %v876
        %1786 = vmatprep.subr.mxu0 0.0
        %1787 = vmatpush1.msra.mxu0 0.0
        %1788 = vmatprep.subr.mxu0 0.0
        %1789 = vmatpush1.msra.mxu0 0.0
        %1790 = vmatprep.subr.mxu0 0.0
        %1791 = vmatpush1.msra.mxu0 0.0
        %1792 = vmatprep.subr.mxu0 0.0
        %1793 = vmatpush1.msra.mxu0 0.0
        %1794 = vmatprep.subr.mxu0 0.0
        %1795 = vmatpush1.msra.mxu0 0.0
        %1796 = vmatprep.subr.mxu0 0.0
        %1797 = vmatpush1.msra.mxu0 0.0
        %1798 = vmatprep.subr.mxu0 0.0
        %1799 = vmatpush1.msra.mxu0 0.0
        %1800 = vmatprep.subr.mxu0 0.0
        %1801 = vmatpush1.msra.mxu0 0.0
        %1802 = vmatprep.subr.mxu0 0.0
        %1803 = vmatpush1.msra.mxu0 0.0
        %1804 = vmatprep.subr.mxu0 0.0
        %1805 = vmatpush1.msra.mxu0 0.0
        %1806 = vmatprep.subr.mxu0 0.0
        %1807 = vmatpush1.msra.mxu0 0.0
        %1808 = vmatprep.subr.mxu0 0.0
        %1809 = vmatpush1.msra.mxu0 0.0
        %1810 = vmatprep.subr.mxu0 0.0
        %1811 = vmatpush1.msra.mxu0 0.0
        %1812 = vmatprep.subr.mxu0 0.0
        %1813 = vmatpush1.msra.mxu0 0.0
        %1814 = vmatprep.subr.mxu0 0.0
        %1815 = vmatpush1.msra.mxu0 0.0
        %1816 = vmatprep.subr.mxu0 0.0
        %1817 = vmatpush1.msra.mxu0 0.0
        %1818 = vmatprep.subr.mxu0 0.0
        %1819 = vmatpush1.msra.mxu0 0.0
        %1820 = vmatprep.subr.mxu0 0.0
        %1821 = vmatpush1.msra.mxu0 0.0
        %1822 = vmatprep.subr.mxu0 0.0
        %1823 = vmatpush1.msra.mxu0 0.0
        %1824 = vmatprep.subr.mxu0 0.0
        %1825 = vmatpush1.msra.mxu0 0.0
        %1826 = vmatprep.subr.mxu0 0.0
        %1827 = vmatpush1.msra.mxu0 0.0
        %1828 = vmatprep.subr.mxu0 0.0
        %1829 = vmatpush1.msra.mxu0 0.0
        %1830 = vmatprep.subr.mxu0 0.0
        %1831 = vmatpush1.msra.mxu0 0.0
        %1832 = vmatprep.subr.mxu0 0.0
        %1833 = vmatpush1.msra.mxu0 0.0
        %1834 = vmatprep.subr.mxu0 0.0
        %1835 = vmatpush1.msra.mxu0 0.0
        %1836 = vmatprep.subr.mxu0 0.0
        %1837 = vmatpush1.msra.mxu0 0.0
        %1838 = vmatprep.subr.mxu0 0.0
        %1839 = vmatpush1.msra.mxu0 0.0
        %1840 = vmatprep.subr.mxu0 0.0
        %1841 = vmatpush1.msra.mxu0 0.0
        %1842 = vmatprep.subr.mxu0 0.0
        %1843 = vmatpush1.msra.mxu0 0.0
        %1844 = vmatprep.subr.mxu0 0.0
        %1845 = vmatpush1.msra.mxu0 0.0
        %1846 = vmatprep.subr.mxu0 0.0
        %1847 = vmatpush1.msra.mxu0 0.0
        %1848 = vmatprep.mubr.f32.mxu0 0.0
        %1849 = vmatmul.mubr.f32.gmra.mrb[0].mxu0 %v1782
        %v1850 = vpop.f32.mrb[0].mxu0
        %v1851 = vadd.f32 0.0, %v1850
        %v1852 = vpop.f32.mrb[0].mxu0
        %1853 = vdwg.mxu0
        %v1854 = vcombine.low %v1632, %v1778
        %v1855 = vcombine.high %v1632, %v1778
        %v1857 = vunpack.c.l.s4 1983009808
        %v1858 = vunpack.c.0.s8 %v1857
        %v1859 = vlaneseq
        %v1860 = vshrl.u32 %v1859, 7
        %v1861 = vsub.s32 %v1858, %v1860
        %v1862 = vrot.slane %v1854, %v1861
        %v1864 = vunpack.c.l.s4 1983009808
        %v1865 = vunpack.c.0.s8 %v1864
        %v1866 = vlaneseq
        %v1867 = vshrl.u32 %v1866, 7
        %v1868 = vsub.s32 %v1865, %v1867
        %v1869 = vrot.slane %v1855, %v1868
        %v1870 = vcombine.low %v1705, %v1851
        %v1871 = vcombine.high %v1705, %v1851
        %v1873 = vunpack.c.l.s4 1983009808
        %v1874 = vunpack.c.0.s8 %v1873
        %v1875 = vlaneseq
        %v1876 = vshrl.u32 %v1875, 7
        %v1877 = vsub.s32 %v1874, %v1876
        %v1878 = vrot.slane %v1870, %v1877
        %v1880 = vunpack.c.l.s4 1983009808
        %v1881 = vunpack.c.0.s8 %v1880
        %v1882 = vlaneseq
        %v1883 = vshrl.u32 %v1882, 7
        %v1884 = vsub.s32 %v1881, %v1883
        %v1885 = vrot.slane %v1871, %v1884
        %v1886 = vcombine.low %v1862, %v1878
        %v1887 = vcombine.high %v1862, %v1878
        %v1889 = vunpack.c.l.s4 1934713408
        %v1890 = vunpack.c.0.s8 %v1889
        %v1891 = vlaneseq
        %v1892 = vshrl.u32 %v1891, 7
        %v1893 = vsub.s32 %v1890, %v1892
        %v1894 = vrot.slane %v1886, %v1893
        %v1896 = vunpack.c.l.s4 1934713408
        %v1897 = vunpack.c.0.s8 %v1896
        %v1898 = vlaneseq
        %v1899 = vshrl.u32 %v1898, 7
        %v1900 = vsub.s32 %v1897, %v1899
        %v1901 = vrot.slane %v1887, %v1900
        %v1902 = vcombine.low %v1869, %v1885
        %v1903 = vcombine.high %v1869, %v1885
        %v1905 = vunpack.c.l.s4 1934713408
        %v1906 = vunpack.c.0.s8 %v1905
        %v1907 = vlaneseq
        %v1908 = vshrl.u32 %v1907, 7
        %v1909 = vsub.s32 %v1906, %v1908
        %v1910 = vrot.slane %v1902, %v1909
        %v1912 = vunpack.c.l.s4 1934713408
        %v1913 = vunpack.c.0.s8 %v1912
        %v1914 = vlaneseq
        %v1915 = vshrl.u32 %v1914, 7
        %v1916 = vsub.s32 %v1913, %v1915
        %v1917 = vrot.slane %v1903, %v1916
        %v1918 = vcombine.high %v1894, 0.0
        %v1919 = vcombine.high %v1901, 0.0
        %v1920 = vcombine.high %v1910, 0.0
        %v1921 = vcombine.high %v1917, 0.0
        %v1922 = vcombine.low %v1894, %v1901
        %v1924 = vunpack.c.l.s4 1983009808
        %v1925 = vunpack.c.0.s8 %v1924
        %v1926 = vlaneseq
        %v1927 = vshrl.u32 %v1926, 7
        %v1928 = vsub.s32 %v1925, %v1927
        %v1929 = vrot.slane %v1922, %v1928
        %v1930 = vcombine.low %v1918, %v1919
        %v1932 = vunpack.c.l.s4 1983009808
        %v1933 = vunpack.c.0.s8 %v1932
        %v1934 = vlaneseq
        %v1935 = vshrl.u32 %v1934, 7
        %v1936 = vsub.s32 %v1933, %v1935
        %v1937 = vrot.slane %v1930, %v1936
        %v1938 = vcombine.low %v1910, %v1917
        %v1940 = vunpack.c.l.s4 1983009808
        %v1941 = vunpack.c.0.s8 %v1940
        %v1942 = vlaneseq
        %v1943 = vshrl.u32 %v1942, 7
        %v1944 = vsub.s32 %v1941, %v1943
        %v1945 = vrot.slane %v1938, %v1944
        %v1946 = vcombine.low %v1920, %v1921
        %v1948 = vunpack.c.l.s4 1983009808
        %v1949 = vunpack.c.0.s8 %v1948
        %v1950 = vlaneseq
        %v1951 = vshrl.u32 %v1950, 7
        %v1952 = vsub.s32 %v1949, %v1951
        %v1953 = vrot.slane %v1946, %v1952
        %v1954 = vcombine.low %v1929, %v1937
        %v1955 = vcombine.high %v1929, %v1937
        %v1957 = vunpack.c.l.s4 1934713408
        %v1958 = vunpack.c.0.s8 %v1957
        %v1959 = vlaneseq
        %v1960 = vshrl.u32 %v1959, 7
        %v1961 = vsub.s32 %v1958, %v1960
        %v1962 = vrot.slane %v1954, %v1961
        %v1964 = vunpack.c.l.s4 1934713408
        %v1965 = vunpack.c.0.s8 %v1964
        %v1966 = vlaneseq
        %v1967 = vshrl.u32 %v1966, 7
        %v1968 = vsub.s32 %v1965, %v1967
        %v1969 = vrot.slane %v1955, %v1968
        %v1970 = vcombine.low %v1945, %v1953
        %v1971 = vcombine.high %v1945, %v1953
        %v1973 = vunpack.c.l.s4 1934713408
        %v1974 = vunpack.c.0.s8 %v1973
        %v1975 = vlaneseq
        %v1976 = vshrl.u32 %v1975, 7
        %v1977 = vsub.s32 %v1974, %v1976
        %v1978 = vrot.slane %v1970, %v1977
        %v1980 = vunpack.c.l.s4 1934713408
        %v1981 = vunpack.c.0.s8 %v1980
        %v1982 = vlaneseq
        %v1983 = vshrl.u32 %v1982, 7
        %v1984 = vsub.s32 %v1981, %v1983
        %v1985 = vrot.slane %v1971, %v1984
        %v1986 = vcombine.low %v1962, %v1978
        %v1987 = vcombine.high %v1962, %v1978
        %v1988 = vcombine.low %v1969, %v1985
        %v1989 = vcombine.high %v1969, %v1985
        %1991 = vrot.lane.b32.xlu0 %v1987, 8
        %v1992 = vpop.permute.xlu0 %1991
        %1995 = vrot.lane.b32.xlu0 %v1988, 16
        %v1996 = vpop.permute.xlu0 %1995
        %1999 = vrot.lane.b32.xlu0 %v1989, 24
        %v2000 = vpop.permute.xlu0 %1999
        %v2002 = vsel %vm877, %v1986, %v1992
        %v2003 = vsel %vm1549, %v2002, %v1996
        %v2004 = vsel %vm1551, %v2003, %v2000
        %v2005 = vld [vmem:[#allocation7] sm:$0xff]
        %v2006 = vld [vmem:[#allocation7 + $0x8] sm:$0xff]
        %v2007 = vld [vmem:[#allocation7 + $0x10] sm:$0xff]
        %v2008 = vld [vmem:[#allocation7 + $0x18] sm:$0xff]
        %v2009 = vld [vmem:[%s5] sm:$0x1]
        %v2011 = vlaneseq
        %v2012 = vshrl.u32 %v2011, 7
        %v2013 = vsub.s32 0, %v2012
        %v2014 = vrot.slane %v2009, %v2013
        %v2017 = vsel %vm361, %v2004, 0
        %2019 = vmatprep.subr.mxu0 0.0
        %2020 = vmatpush1.msra.mxu0 %v2005
        %2021 = vmatprep.subr.mxu0 0.0
        %2022 = vmatpush1.msra.mxu0 %v2006
        %2023 = vmatprep.subr.mxu0 0.0
        %2024 = vmatpush1.msra.mxu0 %v2007
        %2025 = vmatprep.subr.mxu0 0.0
        %2026 = vmatpush1.msra.mxu0 %v2008
        %2027 = vmatprep.subr.mxu0 0.0
        %2028 = vmatpush1.msra.mxu0 0.0
        %2029 = vmatprep.subr.mxu0 0.0
        %2030 = vmatpush1.msra.mxu0 0.0
        %2031 = vmatprep.subr.mxu0 0.0
        %2032 = vmatpush1.msra.mxu0 0.0
        %2033 = vmatprep.subr.mxu0 0.0
        %2034 = vmatpush1.msra.mxu0 0.0
        %2035 = vmatprep.subr.mxu0 0.0
        %2036 = vmatpush1.msra.mxu0 0.0
        %2037 = vmatprep.subr.mxu0 0.0
        %2038 = vmatpush1.msra.mxu0 0.0
        %2039 = vmatprep.subr.mxu0 0.0
        %2040 = vmatpush1.msra.mxu0 0.0
        %2041 = vmatprep.subr.mxu0 0.0
        %2042 = vmatpush1.msra.mxu0 0.0
        %2043 = vmatprep.subr.mxu0 0.0
        %2044 = vmatpush1.msra.mxu0 0.0
        %2045 = vmatprep.subr.mxu0 0.0
        %2046 = vmatpush1.msra.mxu0 0.0
        %2047 = vmatprep.subr.mxu0 0.0
        %2048 = vmatpush1.msra.mxu0 0.0
        %2049 = vmatprep.subr.mxu0 0.0
        %2050 = vmatpush1.msra.mxu0 0.0
        %2051 = vmatprep.subr.mxu0 0.0
        %2052 = vmatpush1.msra.mxu0 0.0
        %2053 = vmatprep.subr.mxu0 0.0
        %2054 = vmatpush1.msra.mxu0 0.0
        %2055 = vmatprep.subr.mxu0 0.0
        %2056 = vmatpush1.msra.mxu0 0.0
        %2057 = vmatprep.subr.mxu0 0.0
        %2058 = vmatpush1.msra.mxu0 0.0
        %2059 = vmatprep.subr.mxu0 0.0
        %2060 = vmatpush1.msra.mxu0 0.0
        %2061 = vmatprep.subr.mxu0 0.0
        %2062 = vmatpush1.msra.mxu0 0.0
        %2063 = vmatprep.subr.mxu0 0.0
        %2064 = vmatpush1.msra.mxu0 0.0
        %2065 = vmatprep.subr.mxu0 0.0
        %2066 = vmatpush1.msra.mxu0 0.0
        %2067 = vmatprep.subr.mxu0 0.0
        %2068 = vmatpush1.msra.mxu0 0.0
        %2069 = vmatprep.subr.mxu0 0.0
        %2070 = vmatpush1.msra.mxu0 0.0
        %2071 = vmatprep.subr.mxu0 0.0
        %2072 = vmatpush1.msra.mxu0 0.0
        %2073 = vmatprep.subr.mxu0 0.0
        %2074 = vmatpush1.msra.mxu0 0.0
        %2075 = vmatprep.subr.mxu0 0.0
        %2076 = vmatpush1.msra.mxu0 0.0
        %2077 = vmatprep.subr.mxu0 0.0
        %2078 = vmatpush1.msra.mxu0 0.0
        %2079 = vmatprep.subr.mxu0 0.0
        %2080 = vmatpush1.msra.mxu0 0.0
        %2081 = vmatprep.subr.mxu0 0.0
        %2082 = vmatpush1.msra.mxu0 0.0
        %2083 = vmatprep.mubr.f32.mxu0 0.0
        %2084 = vmatmul.mubr.f32.gmra.mrb[0].mxu0 %v2017
        %v2085 = vpop.f32.mrb[0].mxu0
        %v2086 = vadd.f32 %v2014, %v2085
        %v2087 = vpop.f32.mrb[0].mxu0
        %2088 = vdwg.mxu0
        %2089 = vst.msk [vmem:[%s337] sm:$0xff] %vm361, %v2086
        %s2090 = sand.u32 %s173, 1
        %s2091 = scalar_lea.sflag [#allocation4], %s2090
        %s2092 = sand.u32 %s173, 1
        %s2093 = smul.addr %s2092, 8
        %s2094 = scalar_lea.vmem [#allocation8], %s2093
        %s2095 = sand.u32 %s199, 1
        %s2096 = scalar_lea.sflag [#allocation10], %s2095
        %s2097 = sand.u32 %s199, 1
        %s2098 = smul.addr %s2097, 4
        %s2099 = scalar_lea.vmem [#allocation9], %s2098
        // Predicated region
        $region57: #{tpu_custom_call.1} parent=43 // pred_check
          %p2100 = pneg %p183
        $region58: #{tpu_custom_call.1} parent=43 // pred_check_branch
          %2102 = sbr.rel (%p2100) target = $region60
        $region59: #{tpu_custom_call.1} parent=43 // pred_region
          %s2104 = ssub.s32 128, 128
          %2105 = vsyncadd %s2091, %s2104
          %s2106 = smul.addr %s29, 128
          %s2107 = scalar_lea.hbm %s6, %s2106
          %s2109 = sshll.u32 %s2094, 4
          %s2110 = int_to_ptr.vmem [resolvable:$true] %s2109
          %2112 = dma.vmem_to_hbm [thread:$0]  %s2110, 128, %s2107, %s2091
        $region60: #{tpu_custom_call.1} parent=43 // pred_fallthru
          _
        // Predicated region
        $region61: #{tpu_custom_call.1} parent=43 // pred_check
          %p2113 = pneg %p209
        $region62: #{tpu_custom_call.1} parent=43 // pred_check_branch
          %2115 = sbr.rel (%p2113) target = $region64
        $region63: #{tpu_custom_call.1} parent=43 // pred_region
          %s2117 = ssub.s32 64, 64
          %2118 = vsyncadd %s2096, %s2117
          %s2119 = smul.addr %s29, 64
          %s2120 = scalar_lea.hbm %s7, %s2119
          %s2122 = sshll.u32 %s2099, 4
          %s2123 = int_to_ptr.vmem [resolvable:$true] %s2122
          %2125 = dma.vmem_to_hbm [thread:$0]  %s2123, 64, %s2120, %s2096
        $region64: #{tpu_custom_call.1} parent=43 // pred_fallthru
          _
      $region44: #{tpu_custom_call.1} parent=5 // pred_fallthru
        _
      %p2126 = scmp.le.s32.totalorder 2, %s24
      // Predicated region
      $region65: #{tpu_custom_call.1} parent=5 // pred_check
        %p2127 = pneg %p2126
      $region66: #{tpu_custom_call.1} parent=5 // pred_check_branch
        %2129 = sbr.rel (%p2127) target = $region68
      $region67: #{tpu_custom_call.1} parent=5 // pred_region
        %s2130 = ssub.s32 %s24, 2
        // Predicated region
        $region69: #{tpu_custom_call.1} parent=67 // pred_check
          %p2131 = pneg %p189
        $region70: #{tpu_custom_call.1} parent=67 // pred_check_branch
          %2133 = sbr.rel (%p2131) target = $region72
        $region71: #{tpu_custom_call.1} parent=67 // pred_region
          %s2134 = sand.u32 %s174, 1
          %s2135 = scalar_lea.sflag [#allocation4], %s2134
          %s2136 = sand.u32 %s174, 1
          %s2137 = smul.addr %s2136, 8
          %s2138 = scalar_lea.vmem [#allocation8], %s2137
          %2139 = dma.done %s2135, 128
        $region72: #{tpu_custom_call.1} parent=67 // pred_fallthru
          _
        // Predicated region
        $region73: #{tpu_custom_call.1} parent=67 // pred_check
          %p2140 = pneg %p215
        $region74: #{tpu_custom_call.1} parent=67 // pred_check_branch
          %2142 = sbr.rel (%p2140) target = $region76
        $region75: #{tpu_custom_call.1} parent=67 // pred_region
          %s2143 = sand.u32 %s200, 1
          %s2144 = scalar_lea.sflag [#allocation10], %s2143
          %s2145 = sand.u32 %s200, 1
          %s2146 = smul.addr %s2145, 4
          %s2147 = scalar_lea.vmem [#allocation9], %s2146
          %2148 = dma.done %s2144, 64
        $region76: #{tpu_custom_call.1} parent=67 // pred_fallthru
          _
      $region68: #{tpu_custom_call.1} parent=5 // pred_fallthru
        _
    $region6: #{tpu_custom_call.1} parent=1 // loop_footer
      %s28 = sadd.s32 1, %s24
    $region7: #{tpu_custom_call.1} parent=1 // loop_footer_branch
      %23 = sbr.rel target = $region3
    $region8: #{tpu_custom_call.1} parent=1 // loop_exit
      _
    %2149 = vsyncpa [#allocation3], 1
    %s2150 = scalar_lea.sflag [#allocation3], 1
    %2151 = vsyncpa %s2150, 1
    %2152 = vsyncpa [#allocation6], 1
    %2153 = vsyncpa [#allocation4], 1
    %s2154 = scalar_lea.sflag [#allocation4], 1
    %2155 = vsyncpa %s2154, 1
    %2156 = vsyncpa [#allocation10], 1
    %s2157 = scalar_lea.sflag [#allocation10], 1
    %2158 = vsyncpa %s2157, 1

</llo_original>
